<compile_context>
chip_gen: v7x
topology: tpu7x:2x2x1
jax: 0.10.0
libtpu: 0.0.40
codegen_flags: <defaults>
</compile_context>

<pallas_src>
import functools

import jax
import jax.numpy as jnp
from jax.experimental import pallas as pl
from jax.experimental.pallas import tpu as pltpu


def _round_up(x, m):
    return (x + m - 1) // m * m


# ---------------------------------------------------------------------------
# Kernel
# ---------------------------------------------------------------------------
def _neumf_kernel(u_ref, m_ref, wb_ref, vb_ref, bf_ref, out_ref, *,
                  embed_dim, half, h1p, h2p):
    # Activations: feature-major, batch in lanes.  May be bf16; compute in f32.
    u = u_ref[...].astype(jnp.float32)            # (embed_dim + half, TB)
    m = m_ref[...].astype(jnp.float32)            # (embed_dim + half, TB)
    wb = wb_ref[...]                              # (2*h1p + h2p, Wc)  f32
    vb = vb_ref[...]                              # (h1p + 2*h2p, 1)   f32

    hi = jax.lax.Precision.HIGHEST

    # --- GMF branch ---------------------------------------------------------
    # final_w[:embed_dim] was folded into the user GMF rows at pack time, so
    # the GMF contribution to the logit is just a sublane reduction (XLU).
    gmf_logit = jnp.sum(u[:embed_dim, :] * m[:embed_dim, :],
                        axis=0, keepdims=True)    # (1, TB)

    # --- MLP branch: split matmul Linear(16->8)+ReLU, Linear(8->4)+ReLU -----
    xu = u[embed_dim:, :]                         # (half, TB)
    xm = m[embed_dim:, :]                         # (half, TB)

    w1u = wb[0:h1p, 0:half]                       # (h1p, half)
    w1m = wb[h1p:2 * h1p, 0:half]                 # (h1p, half)
    w2p = wb[2 * h1p:2 * h1p + h2p, 0:h1p]        # (h2p, h1p)  zero-padded rows
    b1 = vb[0:h1p, :]                             # (h1p, 1)
    b2 = vb[h1p:h1p + h2p, :]                     # (h2p, 1)
    wfm = vb[h1p + h2p:h1p + 2 * h2p, :]          # (h2p, 1)    zero-padded rows

    h = (jnp.dot(w1u, xu, preferred_element_type=jnp.float32, precision=hi)
         + jnp.dot(w1m, xm, preferred_element_type=jnp.float32, precision=hi)
         + b1)
    h = jnp.maximum(h, 0.0)                       # (h1p, TB)
    h = jnp.dot(w2p, h, preferred_element_type=jnp.float32, precision=hi) + b2
    h = jnp.maximum(h, 0.0)                       # (h2p, TB); padded rows are 0

    # --- final layer: VPU multiply + sublane reduce + sigmoid ---------------
    logit = (gmf_logit
             + jnp.sum(h * wfm, axis=0, keepdims=True)
             + bf_ref[0])                         # (1, TB)

    out_ref[...] = jax.nn.sigmoid(logit) * 4.0 + 1.0


# ---------------------------------------------------------------------------
# Parameter packing (done once, outside the per-call forward)
# ---------------------------------------------------------------------------
def pack_params(params, embed_dim, mlp_layer_sizes, embed_dtype=jnp.bfloat16):
    mlp0 = mlp_layer_sizes[0]
    half = mlp0 // 2
    h1, h2 = mlp_layer_sizes[1], mlp_layer_sizes[2]
    assert embed_dim % 8 == 0 and half % 8 == 0 and h1 % 8 == 0, \
        "kernel path assumes 8-aligned embed_dim / mlp widths"

    h1p = _round_up(h1, 8)
    h2p = _round_up(h2, 8)
    wc = max(half, h1p)

    wf = params["final_w"].reshape(-1)            # (embed_dim + h2,)

    # Fold final_w[:embed_dim] into the GMF user rows (pure filler removal in
    # the kernel; cannot do the same for the MLP slice because of the ReLU).
    gmf_user_scaled = params["gmf_user_emb"] * wf[:embed_dim][None, :]

    # Fused + transposed embedding tables: (feat, num_rows); feature rows are
    # [gmf (embed_dim) ; mlp (half)].  One gather per id stream.
    user_table_t = jnp.concatenate(
        [gmf_user_scaled, params["mlp_user_emb"]], axis=1).T
    movie_table_t = jnp.concatenate(
        [params["gmf_movie_emb"], params["mlp_movie_emb"]], axis=1).T

    # Weight block: [w1_user ; w1_movie ; w2 (zero-padded)]   (f32, tiny)
    w1 = params["mlp_w1"]                         # (h1, mlp0)   PyTorch (out,in)
    w2 = params["mlp_w2"]                         # (h2, h1)
    wb = jnp.zeros((2 * h1p + h2p, wc), jnp.float32)
    wb = wb.at[0:h1, 0:half].set(w1[:, :half])
    wb = wb.at[h1p:h1p + h1, 0:half].set(w1[:, half:])
    wb = wb.at[2 * h1p:2 * h1p + h2, 0:h1].set(w2)

    # Column-vector block: [b1 ; b2(pad) ; wf_mlp(pad)]       (f32, tiny)
    vb = jnp.zeros((h1p + 2 * h2p, 1), jnp.float32)
    vb = vb.at[0:h1, 0].set(params["mlp_b1"])
    vb = vb.at[h1p:h1p + h2, 0].set(params["mlp_b2"])
    vb = vb.at[h1p + h2p:h1p + h2p + h2, 0].set(wf[embed_dim:])

    return {
        "user_table_t": user_table_t.astype(embed_dtype),
        "movie_table_t": movie_table_t.astype(embed_dtype),
        "w_block": wb,
        "v_block": vb,
        "b_final": params["final_b"].reshape(1).astype(jnp.float32),
        "meta": (embed_dim, half, h1p, h2p),
    }


# ---------------------------------------------------------------------------
# Forward
# ---------------------------------------------------------------------------
def neumf_forward(user_ids, movie_ids, packed, *, tb_max=16384):
    embed_dim, half, h1p, h2p = packed["meta"]
    feat = embed_dim + half
    B = user_ids.shape[0]

    # Batch tile (lanes): multiple of 128, large enough to amortize the
    # ~0.35us per-grid-step overhead, and >=2 grid steps whenever the batch
    # allows so the "parallel" axis can use both TensorCores on v7x.
    b128 = _round_up(B, 128)
    steps = pl.cdiv(b128, tb_max)
    if b128 >= 256:
        steps = max(steps, 2)
    TB = _round_up(pl.cdiv(b128, steps), 128)
    B_pad = TB * steps

    if B_pad != B:
        pad = B_pad - B
        user_ids = jnp.pad(user_ids, (0, pad))    # pad with a valid index (0)
        movie_ids = jnp.pad(movie_ids, (0, pad))

    # One fused gather per id stream; batch ends up in the lane dimension.
    # TODO(synk): profile this minor-dim gather; if it lowers to a slow path,
    # switch to a row-major gather + fused layout change (or fuse the gather
    # into the kernel input pipeline).
    u_feat = jnp.take(packed["user_table_t"], user_ids, axis=1)    # (feat, B_pad)
    m_feat = jnp.take(packed["movie_table_t"], movie_ids, axis=1)  # (feat, B_pad)

    kernel = functools.partial(_neumf_kernel, embed_dim=embed_dim, half=half,
                               h1p=h1p, h2p=h2p)

    out = pl.pallas_call(
        kernel,
        out_shape=jax.ShapeDtypeStruct((1, B_pad), jnp.float32),
        grid=(steps,),
        in_specs=[
            pl.BlockSpec((feat, TB), lambda i: (0, i)),               # user feats
            pl.BlockSpec((feat, TB), lambda i: (0, i)),               # movie feats
            pl.BlockSpec(packed["w_block"].shape, lambda i: (0, 0)),  # resident
            pl.BlockSpec(packed["v_block"].shape, lambda i: (0, 0)),  # resident
            pl.BlockSpec(memory_space=pltpu.MemorySpace.SMEM),        # final bias
        ],
        out_specs=pl.BlockSpec((1, TB), lambda i: (0, i)),            # lane-dense
        compiler_params=pltpu.CompilerParams(
            dimension_semantics=("parallel",)),
    )(u_feat, m_feat, packed["w_block"], packed["v_block"], packed["b_final"])

    # output.squeeze() semantics: (1, B_pad) -> (B,)
    return out.reshape(B_pad)[:B]


# ---------------------------------------------------------------------------
# Init + pure-JAX reference (matches the PyTorch module exactly, in f32)
# ---------------------------------------------------------------------------
def init_params(key, num_users, num_movies, embed_dim, mlp_layer_sizes):
    ks = jax.random.split(key, 10)
    mlp_half = mlp_layer_sizes[0] // 2
    p = {
        # nn.Embedding default init: N(0, 1)
        "gmf_user_emb": jax.random.normal(ks[0], (num_users, embed_dim), jnp.float32),
        "gmf_movie_emb": jax.random.normal(ks[1], (num_movies, embed_dim), jnp.float32),
        "mlp_user_emb": jax.random.normal(ks[2], (num_users, mlp_half), jnp.float32),
        "mlp_movie_emb": jax.random.normal(ks[3], (num_movies, mlp_half), jnp.float32),
    }

    # nn.Linear default init: U(-1/sqrt(in), 1/sqrt(in))
    def lin(kw, kb, fan_in, fan_out):
        bound = 1.0 / jnp.sqrt(fan_in)
        w = jax.random.uniform(kw, (fan_out, fan_in), jnp.float32, -bound, bound)
        b = jax.random.uniform(kb, (fan_out,), jnp.float32, -bound, bound)
        return w, b

    p["mlp_w1"], p["mlp_b1"] = lin(ks[4], ks[5], mlp_layer_sizes[0], mlp_layer_sizes[1])
    p["mlp_w2"], p["mlp_b2"] = lin(ks[6], ks[7], mlp_layer_sizes[1], mlp_layer_sizes[2])
    p["final_w"], p["final_b"] = lin(ks[8], ks[9], embed_dim + mlp_layer_sizes[-1], 1)
    return p


def reference_forward(user_ids, movie_ids, params):
    gmf = params["gmf_user_emb"][user_ids] * params["gmf_movie_emb"][movie_ids]
    mlp = jnp.concatenate([params["mlp_user_emb"][user_ids],
                           params["mlp_movie_emb"][movie_ids]], axis=-1)
    mlp = jnp.maximum(mlp @ params["mlp_w1"].T + params["mlp_b1"], 0.0)
    mlp = jnp.maximum(mlp @ params["mlp_w2"].T + params["mlp_b2"], 0.0)
    combined = jnp.concatenate([gmf, mlp], axis=-1)
    logit = combined @ params["final_w"].T + params["final_b"]
    return jax.nn.sigmoid(logit).squeeze() * 4.0 + 1.0


if __name__ == "__main__":
    num_users, num_movies = 64, 48
    embed_dim = 16
    mlp_layer_sizes = [16, 8, 4]
    batch = 200   # not a multiple of 128 -> exercises padding + 2-step grid

    key = jax.random.PRNGKey(0)
    kp, ku, km = jax.random.split(key, 3)
    params = init_params(kp, num_users, num_movies, embed_dim, mlp_layer_sizes)

    user_ids = jax.random.randint(ku, (batch,), 0, num_users, dtype=jnp.int32)
    movie_ids = jax.random.randint(km, (batch,), 0, num_movies, dtype=jnp.int32)

    ref = reference_forward(user_ids, movie_ids, params)

    # 1) f32 tables: exact-semantics check against the PyTorch-equivalent ref.
    packed_f32 = pack_params(params, embed_dim, mlp_layer_sizes,
                             embed_dtype=jnp.float32)
    out_f32 = jax.block_until_ready(neumf_forward(user_ids, movie_ids, packed_f32))
    assert out_f32.shape == (batch,)
    assert jnp.allclose(out_f32, ref, atol=1e-5, rtol=1e-5), \
        ("f32 mismatch", float(jnp.max(jnp.abs(out_f32 - ref))))

    # 2) bf16 tables (default fast path): same semantics up to embedding
    #    quantization (output range is [1, 5]).
    packed_bf16 = pack_params(params, embed_dim, mlp_layer_sizes)
    out_bf16 = jax.block_until_ready(neumf_forward(user_ids, movie_ids, packed_bf16))
    assert out_bf16.shape == (batch,)
    assert jnp.allclose(out_bf16, ref, atol=1e-1, rtol=0.0), \
        ("bf16 mismatch", float(jnp.max(jnp.abs(out_bf16 - ref))))

    print("KERNEL_OK")
</pallas_src>

<mosaic_0001>
module attributes {stable_mosaic.version = 11 : i64} {
  func.func @_neumf_kernel(%arg0: i32, %arg1: memref<24x128xf32, #tpu.memory_space<vmem>>, %arg2: memref<24x128xf32, #tpu.memory_space<vmem>>, %arg3: memref<24x8xf32, #tpu.memory_space<vmem>>, %arg4: memref<24x1xf32, #tpu.memory_space<vmem>>, %arg5: memref<1xf32, #tpu.memory_space<smem>>, %arg6: memref<1x128xf32, #tpu.memory_space<vmem>>) attributes {dimension_semantics = [#tpu.dimension_semantics<parallel>], iteration_bounds = array<i64: 2>, scalar_prefetch = 0 : i64, scratch_operands = 0 : i64, tpu.core_type = #tpu.core_type<tc>, window_params = [{transform_indices = @transform_0, window_bounds = array<i64: 24, 128>}, {transform_indices = @transform_1, window_bounds = array<i64: 24, 128>}, {pipeline_mode = #tpu.pipeline_mode<synchronous>, transform_indices = @transform_2, window_bounds = array<i64: 24, 8>}, {pipeline_mode = #tpu.pipeline_mode<synchronous>, transform_indices = @transform_3, window_bounds = array<i64: 24, 1>}, {transform_indices = @transform_4, window_bounds = array<i64: 1>}, {transform_indices = @transform_5, window_bounds = array<i64: 1, 128>}]} {
    %c0 = arith.constant 0 : index
    %c0_0 = arith.constant 0 : index
    %0 = vector.load %arg1[%c0, %c0_0] : memref<24x128xf32, #tpu.memory_space<vmem>>, vector<24x128xf32>
    %c0_1 = arith.constant 0 : index
    %c0_2 = arith.constant 0 : index
    %1 = vector.load %arg2[%c0_1, %c0_2] : memref<24x128xf32, #tpu.memory_space<vmem>>, vector<24x128xf32>
    %c0_3 = arith.constant 0 : index
    %c0_4 = arith.constant 0 : index
    %2 = vector.load %arg3[%c0_3, %c0_4] : memref<24x8xf32, #tpu.memory_space<vmem>>, vector<24x8xf32>
    %c0_5 = arith.constant 0 : index
    %c0_6 = arith.constant 0 : index
    %3 = vector.load %arg4[%c0_5, %c0_6] : memref<24x1xf32, #tpu.memory_space<vmem>>, vector<24x1xf32>
    %4 = vector.extract_strided_slice %0 {offsets = [0, 0], sizes = [16, 128], strides = [1, 1]} : vector<24x128xf32> to vector<16x128xf32>
    %5 = vector.extract_strided_slice %1 {offsets = [0, 0], sizes = [16, 128], strides = [1, 1]} : vector<24x128xf32> to vector<16x128xf32>
    %6 = arith.mulf %4, %5 : vector<16x128xf32>
    %cst = arith.constant dense<0.000000e+00> : vector<128xf32>
    %7 = vector.multi_reduction <add>, %6, %cst [0] : vector<16x128xf32> to vector<128xf32>
    %8 = vector.shape_cast %7 : vector<128xf32> to vector<1x128xf32>
    %9 = vector.extract_strided_slice %0 {offsets = [16, 0], sizes = [8, 128], strides = [1, 1]} : vector<24x128xf32> to vector<8x128xf32>
    %10 = vector.extract_strided_slice %1 {offsets = [16, 0], sizes = [8, 128], strides = [1, 1]} : vector<24x128xf32> to vector<8x128xf32>
    %11 = vector.extract_strided_slice %2 {offsets = [0, 0], sizes = [8, 8], strides = [1, 1]} : vector<24x8xf32> to vector<8x8xf32>
    %12 = vector.extract_strided_slice %2 {offsets = [8, 0], sizes = [8, 8], strides = [1, 1]} : vector<24x8xf32> to vector<8x8xf32>
    %13 = vector.extract_strided_slice %2 {offsets = [16, 0], sizes = [8, 8], strides = [1, 1]} : vector<24x8xf32> to vector<8x8xf32>
    %14 = vector.extract_strided_slice %3 {offsets = [0, 0], sizes = [8, 1], strides = [1, 1]} : vector<24x1xf32> to vector<8x1xf32>
    %15 = vector.extract_strided_slice %3 {offsets = [8, 0], sizes = [8, 1], strides = [1, 1]} : vector<24x1xf32> to vector<8x1xf32>
    %16 = vector.extract_strided_slice %3 {offsets = [16, 0], sizes = [8, 1], strides = [1, 1]} : vector<24x1xf32> to vector<8x1xf32>
    %cst_7 = arith.constant dense<0.000000e+00> : vector<8x128xf32>
    %17 = tpu.matmul %11, %9, %cst_7 {dimension_numbers = #tpu.dot_dimension_numbers<[1], [0], [0], [1], [0, 0, 1, 1], [], []>, precision = #tpu.contract_precision<fp32>} : vector<8x8xf32>, vector<8x128xf32>, vector<8x128xf32> -> vector<8x128xf32>
    %cst_8 = arith.constant dense<0.000000e+00> : vector<8x128xf32>
    %18 = tpu.matmul %12, %10, %cst_8 {dimension_numbers = #tpu.dot_dimension_numbers<[1], [0], [0], [1], [0, 0, 1, 1], [], []>, precision = #tpu.contract_precision<fp32>} : vector<8x8xf32>, vector<8x128xf32>, vector<8x128xf32> -> vector<8x128xf32>
    %19 = arith.addf %17, %18 : vector<8x128xf32>
    %20 = vector.broadcast %14 : vector<8x1xf32> to vector<8x128xf32>
    %21 = arith.addf %19, %20 : vector<8x128xf32>
    %cst_9 = arith.constant 0.000000e+00 : f32
    %22 = vector.broadcast %cst_9 : f32 to vector<8x128xf32>
    %23 = arith.maximumf %21, %22 : vector<8x128xf32>
    %cst_10 = arith.constant dense<0.000000e+00> : vector<8x128xf32>
    %24 = tpu.matmul %13, %23, %cst_10 {dimension_numbers = #tpu.dot_dimension_numbers<[1], [0], [0], [1], [0, 0, 1, 1], [], []>, precision = #tpu.contract_precision<fp32>} : vector<8x8xf32>, vector<8x128xf32>, vector<8x128xf32> -> vector<8x128xf32>
    %25 = vector.broadcast %15 : vector<8x1xf32> to vector<8x128xf32>
    %26 = arith.addf %24, %25 : vector<8x128xf32>
    %cst_11 = arith.constant 0.000000e+00 : f32
    %27 = vector.broadcast %cst_11 : f32 to vector<8x128xf32>
    %28 = arith.maximumf %26, %27 : vector<8x128xf32>
    %29 = vector.broadcast %16 : vector<8x1xf32> to vector<8x128xf32>
    %30 = arith.mulf %28, %29 : vector<8x128xf32>
    %cst_12 = arith.constant dense<0.000000e+00> : vector<128xf32>
    %31 = vector.multi_reduction <add>, %30, %cst_12 [0] : vector<8x128xf32> to vector<128xf32>
    %32 = vector.shape_cast %31 : vector<128xf32> to vector<1x128xf32>
    %33 = arith.addf %8, %32 : vector<1x128xf32>
    %c0_13 = arith.constant 0 : index
    %34 = memref.load %arg5[%c0_13] : memref<1xf32, #tpu.memory_space<smem>>
    %35 = vector.broadcast %34 : f32 to vector<1x128xf32>
    %36 = arith.addf %33, %35 : vector<1x128xf32>
    %37 = arith.negf %36 : vector<1x128xf32>
    %38 = math.exp %37 : vector<1x128xf32>
    %cst_14 = arith.constant 1.000000e+00 : f32
    %39 = vector.broadcast %cst_14 : f32 to vector<1x128xf32>
    %40 = arith.addf %39, %38 : vector<1x128xf32>
    %41 = arith.divf %39, %40 : vector<1x128xf32>
    %cst_15 = arith.constant 4.000000e+00 : f32
    %42 = vector.broadcast %cst_15 : f32 to vector<1x128xf32>
    %43 = arith.mulf %41, %42 : vector<1x128xf32>
    %cst_16 = arith.constant 1.000000e+00 : f32
    %44 = vector.broadcast %cst_16 : f32 to vector<1x128xf32>
    %45 = arith.addf %43, %44 : vector<1x128xf32>
    %c0_17 = arith.constant 0 : index
    %c0_18 = arith.constant 0 : index
    %46 = vector.load %arg6[%c0_17, %c0_18] : memref<1x128xf32, #tpu.memory_space<vmem>>, vector<1x128xf32>
    tpu.vector_store %arg6[%c0_17, %c0_18], %45 {strides = array<i32>} : memref<1x128xf32, #tpu.memory_space<vmem>>, vector<1x128xf32>,
    return
  }
  func.func @transform_0(%arg0: i32) -> (i32, i32) {
    %c0_i32 = arith.constant 0 : i32
    %c0_i32_0 = arith.constant 0 : i32
    return %c0_i32, %arg0 : i32, i32
  }
  func.func @transform_1(%arg0: i32) -> (i32, i32) {
    %c0_i32 = arith.constant 0 : i32
    %c0_i32_0 = arith.constant 0 : i32
    return %c0_i32, %arg0 : i32, i32
  }
  func.func @transform_2(%arg0: i32) -> (i32, i32) {
    %c0_i32 = arith.constant 0 : i32
    %c0_i32_0 = arith.constant 0 : i32
    %c0_i32_1 = arith.constant 0 : i32
    return %c0_i32, %c0_i32_0 : i32, i32
  }
  func.func @transform_3(%arg0: i32) -> (i32, i32) {
    %c0_i32 = arith.constant 0 : i32
    %c0_i32_0 = arith.constant 0 : i32
    %c0_i32_1 = arith.constant 0 : i32
    return %c0_i32, %c0_i32_0 : i32, i32
  }
  func.func @transform_4(%arg0: i32) -> i32 {
    %c0_i32 = arith.constant 0 : i32
    %c0_i32_0 = arith.constant 0 : i32
    return %c0_i32 : i32
  }
  func.func @transform_5(%arg0: i32) -> (i32, i32) {
    %c0_i32 = arith.constant 0 : i32
    %c0_i32_0 = arith.constant 0 : i32
    return %c0_i32, %arg0 : i32, i32
  }
}

</mosaic_0001>

<llo_original>
// kernel: tpu_custom_call.1
$region0: #{tpu_custom_call.1}
  #allocation0 [shape = 'u32[]', space=smem, size = 0x4, offset = 0x4, fixed_abs, tag = 'smem constant byte address 0x4 - core index']
  #allocation1 [shape = 'u32[144,128]{1,0:T(1,128)}', space=vmem, size = 0x12000, scoped, tag = 'internal scratch']
  #allocation2 [shape = 'f32[1]{0:T(128)S(6)}', space=smem, size = 0x200, scoped, tag = 'scoped memory for tpu_custom_call.1']
  %s0 = inlined_call_operand.vmem [shape: f32[24,256], index: 0, kind: input, shape index: {}]
  %s1 = inlined_call_operand.hbm [shape: f32[24,256], index: 1, kind: input, shape index: {}]
  %s2 = inlined_call_operand.vmem [shape: f32[24,8], index: 2, kind: input, shape index: {}]
  %s3 = inlined_call_operand.vmem [shape: f32[24,1], index: 3, kind: input, shape index: {}]
  %s4 = inlined_call_operand.<no memory space> [shape: f32[1], index: 4, kind: input, shape index: {}]
  %s5 = inlined_call_operand.hbm [shape: f32[1,256], index: 5, kind: output, shape index: {}]
  %s6 = sld [smem:[#allocation0]]
  $region95: #{tpu_custom_call.1} parent=0
    _
  %s8 = ssub.s32 1, %s6
  %s9 = scalar_select 0, %s8, %s6
  %10 = sst [smem:[#allocation2]] %s4
  $region1: #{tpu_custom_call.1} parent=0
    #allocation3 [shape = 'u8[24576]{0}', space=vmem, size = 0x6000, scoped, tag = 'input window, operand 0']
    #allocation4 [shape = 'u8[24576]{0}', space=vmem, size = 0x6000, scoped, tag = 'input window, operand 1']
    #allocation5 [shape = 's32[2]{0}', space=sflag, size = 0x8, scoped, tag = 'scoped memory for tpu_custom_call.1']
    #allocation6 [shape = 's32[2]{0}', space=sflag, size = 0x8, scoped, tag = 'scoped memory for tpu_custom_call.1']
    #allocation7 [shape = 'u8[1024]{0}', space=vmem, size = 0x400, scoped, tag = 'output window, operand 0']
    %11 = vsyncpa [#allocation5], 0
    %s12 = scalar_lea.sflag [#allocation5], 1
    %13 = vsyncpa %s12, 0
    %14 = vsyncpa [#allocation6], 0
    %s15 = scalar_lea.sflag [#allocation6], 1
    %16 = vsyncpa %s15, 0
    loop: start=0, step=1, limit=4
    $region2: #{tpu_custom_call.1} parent=1 // loop_pre_header
      _
    $region3: #{tpu_custom_call.1} parent=1 // loop_header
      %s18 = sphi 0, %s22
      %p19 = scmp.ge.s32.totalorder %s18, 4
      %s28 = sphi 0, %s30
      %s31 = sphi 0, %s28
      %s32 = sphi 0, %s31
      %s48 = sphi 0, %s32
      %s54 = sphi 0, %s56
      %s57 = sphi 0, %s54
      %s58 = sphi 0, %s57
      %s74 = sphi 0, %s58
      %s78 = sphi 0, %s78
      %s80 = sphi 0, %s78
      %s81 = sphi 0, %s80
      %s95 = sphi 0, %s81
      %s99 = sphi 0, %s99
      %s101 = sphi 0, %s99
      %s102 = sphi 0, %s101
      %s116 = sphi 0, %s102
      %s120 = sphi 0, %s120
      %s122 = sphi 0, %s120
      %s123 = sphi 0, %s122
      %s137 = sphi 0, %s123
      %s143 = sphi 0, %s145
      %s146 = sphi 0, %s143
      %s147 = sphi 0, %s146
      %s163 = sphi 0, %s147
    $region4: #{tpu_custom_call.1} parent=1 // loop_header_branch
      %21 = sbr.rel (%p19) target = $region8
    $region5: #{tpu_custom_call.1} parent=1 // loop_body
      %s23 = ssub.s32 %s18, 1
      %s24 = ssub.s32 %s18, 2
      %s25 = sadd.s32 %s18, 1
      %s26 = ssub.s32 %s18, %s25
      %p27 = scmp.eq.s32.totalorder %s26, 0
      %s29 = sadd.s32 %s28, 1
      %s30 = scalar_select %p27, %s28, %s29
      %p33 = pneg %p27
      %p34 = scmp.eq.s32.totalorder %s18, 1
      %p35 = por %p33, %p34
      %p36 = scmp.ne.s32.totalorder %s28, %s31
      %p37 = scmp.eq.s32.totalorder %s18, 0
      %p38 = por %p36, %p37
      %p39 = scmp.ne.s32.totalorder %s28, %s31
      %p40 = scmp.eq.s32.totalorder %s23, 1
      %p41 = por %p39, %p40
      %p42 = scmp.ne.s32.totalorder %s31, %s32
      %p43 = scmp.eq.s32.totalorder %s23, 0
      %p44 = por %p42, %p43
      %p45 = scmp.ne.s32.totalorder %s31, %s32
      %p46 = scmp.eq.s32.totalorder %s24, 1
      %p47 = por %p45, %p46
      %p49 = scmp.ne.s32.totalorder %s32, %s48
      %p50 = scmp.eq.s32.totalorder %s24, 0
      %p51 = por %p49, %p50
      %s52 = ssub.s32 %s18, %s25
      %p53 = scmp.eq.s32.totalorder %s52, 0
      %s55 = sadd.s32 %s54, 1
      %s56 = scalar_select %p53, %s54, %s55
      %p59 = pneg %p53
      %p60 = scmp.eq.s32.totalorder %s18, 1
      %p61 = por %p59, %p60
      %p62 = scmp.ne.s32.totalorder %s54, %s57
      %p63 = scmp.eq.s32.totalorder %s18, 0
      %p64 = por %p62, %p63
      %p65 = scmp.ne.s32.totalorder %s54, %s57
      %p66 = scmp.eq.s32.totalorder %s23, 1
      %p67 = por %p65, %p66
      %p68 = scmp.ne.s32.totalorder %s57, %s58
      %p69 = scmp.eq.s32.totalorder %s23, 0
      %p70 = por %p68, %p69
      %p71 = scmp.ne.s32.totalorder %s57, %s58
      %p72 = scmp.eq.s32.totalorder %s24, 1
      %p73 = por %p71, %p72
      %p75 = scmp.ne.s32.totalorder %s58, %s74
      %p76 = scmp.eq.s32.totalorder %s24, 0
      %p77 = por %p75, %p76
      %s79 = sadd.s32 %s78, 1
      %p82 = scmp.eq.s32.totalorder %s18, 1
      %p83 = scmp.ne.s32.totalorder %s78, %s80
      %p84 = scmp.eq.s32.totalorder %s18, 0
      %p85 = por %p83, %p84
      %p86 = scmp.ne.s32.totalorder %s78, %s80
      %p87 = scmp.eq.s32.totalorder %s23, 1
      %p88 = por %p86, %p87
      %p89 = scmp.ne.s32.totalorder %s80, %s81
      %p90 = scmp.eq.s32.totalorder %s23, 0
      %p91 = por %p89, %p90
      %p92 = scmp.ne.s32.totalorder %s80, %s81
      %p93 = scmp.eq.s32.totalorder %s24, 1
      %p94 = por %p92, %p93
      %p96 = scmp.ne.s32.totalorder %s81, %s95
      %p97 = scmp.eq.s32.totalorder %s24, 0
      %p98 = por %p96, %p97
      %s100 = sadd.s32 %s99, 1
      %p103 = scmp.eq.s32.totalorder %s18, 1
      %p104 = scmp.ne.s32.totalorder %s99, %s101
      %p105 = scmp.eq.s32.totalorder %s18, 0
      %p106 = por %p104, %p105
      %p107 = scmp.ne.s32.totalorder %s99, %s101
      %p108 = scmp.eq.s32.totalorder %s23, 1
      %p109 = por %p107, %p108
      %p110 = scmp.ne.s32.totalorder %s101, %s102
      %p111 = scmp.eq.s32.totalorder %s23, 0
      %p112 = por %p110, %p111
      %p113 = scmp.ne.s32.totalorder %s101, %s102
      %p114 = scmp.eq.s32.totalorder %s24, 1
      %p115 = por %p113, %p114
      %p117 = scmp.ne.s32.totalorder %s102, %s116
      %p118 = scmp.eq.s32.totalorder %s24, 0
      %p119 = por %p117, %p118
      %s121 = sadd.s32 %s120, 1
      %p124 = scmp.eq.s32.totalorder %s18, 1
      %p125 = scmp.ne.s32.totalorder %s120, %s122
      %p126 = scmp.eq.s32.totalorder %s18, 0
      %p127 = por %p125, %p126
      %p128 = scmp.ne.s32.totalorder %s120, %s122
      %p129 = scmp.eq.s32.totalorder %s23, 1
      %p130 = por %p128, %p129
      %p131 = scmp.ne.s32.totalorder %s122, %s123
      %p132 = scmp.eq.s32.totalorder %s23, 0
      %p133 = por %p131, %p132
      %p134 = scmp.ne.s32.totalorder %s122, %s123
      %p135 = scmp.eq.s32.totalorder %s24, 1
      %p136 = por %p134, %p135
      %p138 = scmp.ne.s32.totalorder %s123, %s137
      %p139 = scmp.eq.s32.totalorder %s24, 0
      %p140 = por %p138, %p139
      %s141 = ssub.s32 %s18, %s25
      %p142 = scmp.eq.s32.totalorder %s141, 0
      %s144 = sadd.s32 %s143, 1
      %s145 = scalar_select %p142, %s143, %s144
      %p148 = pneg %p142
      %p149 = scmp.eq.s32.totalorder %s18, 1
      %p150 = por %p148, %p149
      %p151 = scmp.ne.s32.totalorder %s143, %s146
      %p152 = scmp.eq.s32.totalorder %s18, 0
      %p153 = por %p151, %p152
      %p154 = scmp.ne.s32.totalorder %s143, %s146
      %p155 = scmp.eq.s32.totalorder %s23, 1
      %p156 = por %p154, %p155
      %p157 = scmp.ne.s32.totalorder %s146, %s147
      %p158 = scmp.eq.s32.totalorder %s23, 0
      %p159 = por %p157, %p158
      %p160 = scmp.ne.s32.totalorder %s146, %s147
      %p161 = scmp.eq.s32.totalorder %s24, 1
      %p162 = por %p160, %p161
      %p164 = scmp.ne.s32.totalorder %s147, %s163
      %p165 = scmp.eq.s32.totalorder %s24, 0
      %p166 = por %p164, %p165
      %p167 = scmp.le.s32.totalorder 1, %s18
      %p168 = scmp.lt.s32.totalorder %s18, 3
      %p169 = pnand %p167, %p168
      %p170 = pneg %p169
      // Predicated region
      $region9: #{tpu_custom_call.1} parent=5 // pred_check
        _
      $region10: #{tpu_custom_call.1} parent=5 // pred_check_branch
        %172 = sbr.rel (%p169) target = $region12
      $region11: #{tpu_custom_call.1} parent=5 // pred_region
        %s173 = ssub.s32 %s18, 1
        // Predicated region
        $region13: #{tpu_custom_call.1} parent=11 // pred_check
          %p174 = pneg %p91
        $region14: #{tpu_custom_call.1} parent=11 // pred_check_branch
          %176 = sbr.rel (%p174) target = $region16
        $region15: #{tpu_custom_call.1} parent=11 // pred_region
          _
        $region16: #{tpu_custom_call.1} parent=11 // pred_fallthru
          _
        // Predicated region
        $region17: #{tpu_custom_call.1} parent=11 // pred_check
          %p177 = pneg %p112
        $region18: #{tpu_custom_call.1} parent=11 // pred_check_branch
          %179 = sbr.rel (%p177) target = $region20
        $region19: #{tpu_custom_call.1} parent=11 // pred_region
          _
        $region20: #{tpu_custom_call.1} parent=11 // pred_fallthru
          _
        // Predicated region
        $region21: #{tpu_custom_call.1} parent=11 // pred_check
          %p180 = pneg %p133
        $region22: #{tpu_custom_call.1} parent=11 // pred_check_branch
          %182 = sbr.rel (%p180) target = $region24
        $region23: #{tpu_custom_call.1} parent=11 // pred_region
          _
        $region24: #{tpu_custom_call.1} parent=11 // pred_fallthru
          _
      $region12: #{tpu_custom_call.1} parent=5 // pred_fallthru
        _
      %p183 = scmp.lt.s32.totalorder %s18, 2
      // Predicated region
      $region25: #{tpu_custom_call.1} parent=5 // pred_check
        %p184 = pneg %p183
      $region26: #{tpu_custom_call.1} parent=5 // pred_check_branch
        %186 = sbr.rel (%p184) target = $region28
      $region27: #{tpu_custom_call.1} parent=5 // pred_region
        // Predicated region
        $region29: #{tpu_custom_call.1} parent=27 // pred_check
          %p187 = pneg %p38
        $region30: #{tpu_custom_call.1} parent=27 // pred_check_branch
          %189 = sbr.rel (%p187) target = $region32
        $region31: #{tpu_custom_call.1} parent=27 // pred_region
          %s190 = sand.u32 %s28, 1
          %s191 = sand.u32 %s28, 1
          %s192 = smul.addr %s191, 24
          %s193 = scalar_lea.vmem [#allocation3], %s192
          %s194 = smul.addr %s18, 8
          %s195 = scalar_lea.vmem %s0, %s194
          // Predicated region
          $region33: #{tpu_custom_call.1} parent=31 // pred_check
            _
          $region34: #{tpu_custom_call.1} parent=31 // pred_check_branch
            %197 = sbr.rel (0) target = $region36
          $region35: #{tpu_custom_call.1} parent=31 // pred_region
            // Predicated region
            $region37: #{tpu_custom_call.1} parent=35 // pred_check
              _
            $region38: #{tpu_custom_call.1} parent=35 // pred_check_branch
              %199 = sbr.rel (0) target = $region40
            $region39: #{tpu_custom_call.1} parent=35 // pred_region
              // Predicated region
              $region52: #{tpu_custom_call.1} parent=39 // pred_check
                _
              $region53: #{tpu_custom_call.1} parent=39 // pred_check_branch
                %218 = sbr.rel (0) target = $region55
              $region54: #{tpu_custom_call.1} parent=39 // pred_region
                loop: start=0, step=1, limit=1
                $region56: #{tpu_custom_call.1} parent=54 // loop_pre_header
                  _
                $region57: #{tpu_custom_call.1} parent=54 // loop_header
                  %s220 = sphi 0, %s224
                  %p221 = scmp.ge.s32.totalorder %s220, 1
                  %s225 = sphi %s195, %s195
                  %s226 = sphi %s193, %s193
                $region58: #{tpu_custom_call.1} parent=54 // loop_header_branch
                  %223 = sbr.rel (%p221) target = $region62
                $region59: #{tpu_custom_call.1} parent=54 // loop_body
                  %v227 = vld [vmem:[%s225] sm:$0xff]
                  %228 = vst [vmem:[%s226] sm:$0xff] %v227
                  %v229 = vld [vmem:[%s225 + $0x10] sm:$0xff]
                  %230 = vst [vmem:[%s226 + $0x8] sm:$0xff] %v229
                  %v231 = vld [vmem:[%s225 + $0x20] sm:$0xff]
                  %232 = vst [vmem:[%s226 + $0x10] sm:$0xff] %v231
                $region60: #{tpu_custom_call.1} parent=54 // loop_footer
                  %s224 = sadd.s32 1, %s220
                $region61: #{tpu_custom_call.1} parent=54 // loop_footer_branch
                  %219 = sbr.rel target = $region57
                $region62: #{tpu_custom_call.1} parent=54 // loop_exit
                  _
              $region55: #{tpu_custom_call.1} parent=39 // pred_fallthru
                _
              // Predicated region
              $region63: #{tpu_custom_call.1} parent=39 // pred_check
                _
              $region64: #{tpu_custom_call.1} parent=39 // pred_check_branch
                %234 = sbr.rel target = $region66
              $region65: #{tpu_custom_call.1} parent=39 // pred_region
                _
              $region66: #{tpu_custom_call.1} parent=39 // pred_fallthru
                _
            $region40: #{tpu_custom_call.1} parent=35 // pred_fallthru
              _
            // Predicated region
            $region41: #{tpu_custom_call.1} parent=35 // pred_check
              _
            $region42: #{tpu_custom_call.1} parent=35 // pred_check_branch
              %201 = sbr.rel target = $region44
            $region43: #{tpu_custom_call.1} parent=35 // pred_region
              loop: start=0, step=1, limit=1
              $region45: #{tpu_custom_call.1} parent=43 // loop_pre_header
                _
              $region46: #{tpu_custom_call.1} parent=43 // loop_header
                %s204 = sphi 0, %s208
                %p205 = scmp.ge.s32.totalorder %s204, 1
                %s209 = sphi %s195, %s195
                %s210 = sphi %s193, %s193
              $region47: #{tpu_custom_call.1} parent=43 // loop_header_branch
                %207 = sbr.rel (%p205) target = $region51
              $region48: #{tpu_custom_call.1} parent=43 // loop_body
                %v211 = vld [vmem:[%s209] sm:$0xff]
                %212 = vst [vmem:[%s210] sm:$0xff] %v211
                %v213 = vld [vmem:[%s209 + $0x10] sm:$0xff]
                %214 = vst [vmem:[%s210 + $0x8] sm:$0xff] %v213
                %v215 = vld [vmem:[%s209 + $0x20] sm:$0xff]
                %216 = vst [vmem:[%s210 + $0x10] sm:$0xff] %v215
              $region49: #{tpu_custom_call.1} parent=43 // loop_footer
                %s208 = sadd.s32 1, %s204
              $region50: #{tpu_custom_call.1} parent=43 // loop_footer_branch
                %203 = sbr.rel target = $region46
              $region51: #{tpu_custom_call.1} parent=43 // loop_exit
                _
            $region44: #{tpu_custom_call.1} parent=35 // pred_fallthru
              _
          $region36: #{tpu_custom_call.1} parent=31 // pred_fallthru
            _
          %235 = vnop
        $region32: #{tpu_custom_call.1} parent=27 // pred_fallthru
          _
        // Predicated region
        $region67: #{tpu_custom_call.1} parent=27 // pred_check
          %p236 = pneg %p64
        $region68: #{tpu_custom_call.1} parent=27 // pred_check_branch
          %238 = sbr.rel (%p236) target = $region70
        $region69: #{tpu_custom_call.1} parent=27 // pred_region
          %s239 = sand.u32 %s54, 1
          %s240 = scalar_lea.sflag [#allocation5], %s239
          %s241 = sand.u32 %s54, 1
          %s242 = smul.addr %s241, 24
          %s243 = scalar_lea.vmem [#allocation4], %s242
          %s245 = ssub.s32 384, 384
          %246 = vsyncadd %s240, %s245
          %s247 = smul.addr %s18, 128
          %s248 = scalar_lea.hbm %s1, %s247
          %s249 = sshll.u32 %s243, 4
          %s250 = int_to_ptr.vmem [resolvable:$true] %s249
          %255 = dma.hbm_to_vmem [thread:$0]  %s248, 384, %s250, %s240, 256, 128, 8
        $region70: #{tpu_custom_call.1} parent=27 // pred_fallthru
          _
      $region28: #{tpu_custom_call.1} parent=5 // pred_fallthru
        _
      %p256 = scmp.le.s32.totalorder 1, %s18
      %p257 = scmp.lt.s32.totalorder %s18, 3
      %p258 = pnand %p256, %p257
      %p259 = pneg %p258
      // Predicated region
      $region71: #{tpu_custom_call.1} parent=5 // pred_check
        _
      $region72: #{tpu_custom_call.1} parent=5 // pred_check_branch
        %261 = sbr.rel (%p258) target = $region74
      $region73: #{tpu_custom_call.1} parent=5 // pred_region
        %s262 = ssub.s32 %s18, 1
        %s263 = sand.u32 %s31, 1
        %s264 = sand.u32 %s31, 1
        %s265 = smul.addr %s264, 24
        %s266 = scalar_lea.vmem [#allocation3], %s265
        // Predicated region
        $region75: #{tpu_custom_call.1} parent=73 // pred_check
          %p267 = pneg %p44
        $region76: #{tpu_custom_call.1} parent=73 // pred_check_branch
          %269 = sbr.rel (%p267) target = $region78
        $region77: #{tpu_custom_call.1} parent=73 // pred_region
          _
        $region78: #{tpu_custom_call.1} parent=73 // pred_fallthru
          _
        %s270 = sand.u32 %s57, 1
        %s271 = scalar_lea.sflag [#allocation5], %s270
        %s272 = sand.u32 %s57, 1
        %s273 = smul.addr %s272, 24
        %s274 = scalar_lea.vmem [#allocation4], %s273
        // Predicated region
        $region79: #{tpu_custom_call.1} parent=73 // pred_check
          %p275 = pneg %p70
        $region80: #{tpu_custom_call.1} parent=73 // pred_check_branch
          %277 = sbr.rel (%p275) target = $region82
        $region81: #{tpu_custom_call.1} parent=73 // pred_region
          %278 = dma.done %s271, 384
        $region82: #{tpu_custom_call.1} parent=73 // pred_fallthru
          _
        %s279 = sand.u32 %s31, 1
        %s280 = sand.u32 %s31, 1
        %s281 = smul.addr %s280, 24
        %s282 = scalar_lea.vmem [#allocation3], %s281
        %p283 = pneg %p44
        %p284 = pneg %p41
        %s285 = sand.u32 %s57, 1
        %s286 = scalar_lea.sflag [#allocation5], %s285
        %s287 = sand.u32 %s57, 1
        %s288 = smul.addr %s287, 24
        %s289 = scalar_lea.vmem [#allocation4], %s288
        %p290 = pneg %p70
        %p291 = pneg %p67
        %p292 = pneg %p91
        %p293 = pneg %p88
        %p294 = pneg %p112
        %p295 = pneg %p109
        %p296 = pneg %p133
        %p297 = pneg %p130
        %p298 = pneg %p159
        %p299 = pneg %p156
        %s300 = sand.u32 %s146, 1
        %s301 = scalar_lea.sflag [#allocation6], %s300
        %s302 = sand.u32 %s146, 1
        %s303 = scalar_lea.vmem [#allocation7], %s302
        %v304 = vld [vmem:[%s266] sm:$0xff]
        %v305 = vld [vmem:[%s266 + $0x8] sm:$0xff]
        %v306 = vld [vmem:[%s266 + $0x10] sm:$0xff]
        %v307 = vld [vmem:[%s274] sm:$0xff]
        %v308 = vld [vmem:[%s274 + $0x8] sm:$0xff]
        %v309 = vld [vmem:[%s274 + $0x10] sm:$0xff]
        %v310 = vld [vmem:[%s2] sm:$0xff]
        %v311 = vld [vmem:[%s2 + $0x8] sm:$0xff]
        %v312 = vld [vmem:[%s2 + $0x10] sm:$0xff]
        %v313 = vld [vmem:[%s3] sm:$0xff]
        %v314 = vld [vmem:[%s3 + $0x8] sm:$0xff]
        %v315 = vld [vmem:[%s3 + $0x10] sm:$0xff]
        %v316 = vmul.f32 %v304, %v307
        %v317 = vmul.f32 %v305, %v308
        %v318 = vadd.f32 %v316, %v317
        %v319 = vrot.slane %v318, 4
        %v320 = vadd.f32 %v318, %v319
        %v321 = vrot.slane %v320, 2
        %v322 = vadd.f32 %v320, %v321
        %v323 = vrot.slane %v322, 1
        %v324 = vadd.f32 %v322, %v323
        %vm325 = vcmask 64512
        %v327 = vsel %vm325, %v311, 0
        %329 = vmatprep.subr.mxu0 0.0
        %v330 = vand.u32 %v309, 4294901760
        %331 = vmatpush1.msra.mxu0 %v330
        %332 = vmatprep.subr.mxu0 0.0
        %333 = vmatpush1.msra.mxu0 0.0
        %334 = vmatprep.subr.mxu0 0.0
        %335 = vmatpush1.msra.mxu0 0.0
        %336 = vmatprep.subr.mxu0 0.0
        %337 = vmatpush1.msra.mxu0 0.0
        %338 = vmatprep.subr.mxu0 0.0
        %339 = vmatpush1.msra.mxu0 0.0
        %340 = vmatprep.subr.mxu0 0.0
        %341 = vmatpush1.msra.mxu0 0.0
        %342 = vmatprep.subr.mxu0 0.0
        %343 = vmatpush1.msra.mxu0 0.0
        %344 = vmatprep.subr.mxu0 0.0
        %345 = vmatpush1.msra.mxu0 0.0
        %346 = vmatprep.subr.mxu0 0.0
        %347 = vmatpush1.msra.mxu0 0.0
        %348 = vmatprep.subr.mxu0 0.0
        %349 = vmatpush1.msra.mxu0 0.0
        %350 = vmatprep.subr.mxu0 0.0
        %351 = vmatpush1.msra.mxu0 0.0
        %352 = vmatprep.subr.mxu0 0.0
        %353 = vmatpush1.msra.mxu0 0.0
        %354 = vmatprep.subr.mxu0 0.0
        %355 = vmatpush1.msra.mxu0 0.0
        %356 = vmatprep.subr.mxu0 0.0
        %357 = vmatpush1.msra.mxu0 0.0
        %358 = vmatprep.subr.mxu0 0.0
        %359 = vmatpush1.msra.mxu0 0.0
        %360 = vmatprep.subr.mxu0 0.0
        %361 = vmatpush1.msra.mxu0 0.0
        %362 = vmatprep.subr.mxu0 0.0
        %363 = vmatpush1.msra.mxu0 0.0
        %364 = vmatprep.subr.mxu0 0.0
        %365 = vmatpush1.msra.mxu0 0.0
        %366 = vmatprep.subr.mxu0 0.0
        %367 = vmatpush1.msra.mxu0 0.0
        %368 = vmatprep.subr.mxu0 0.0
        %369 = vmatpush1.msra.mxu0 0.0
        %370 = vmatprep.subr.mxu0 0.0
        %371 = vmatpush1.msra.mxu0 0.0
        %372 = vmatprep.subr.mxu0 0.0
        %373 = vmatpush1.msra.mxu0 0.0
        %374 = vmatprep.subr.mxu0 0.0
        %375 = vmatpush1.msra.mxu0 0.0
        %376 = vmatprep.subr.mxu0 0.0
        %377 = vmatpush1.msra.mxu0 0.0
        %378 = vmatprep.subr.mxu0 0.0
        %379 = vmatpush1.msra.mxu0 0.0
        %380 = vmatprep.subr.mxu0 0.0
        %381 = vmatpush1.msra.mxu0 0.0
        %382 = vmatprep.subr.mxu0 0.0
        %383 = vmatpush1.msra.mxu0 0.0
        %384 = vmatprep.subr.mxu0 0.0
        %385 = vmatpush1.msra.mxu0 0.0
        %386 = vmatprep.subr.mxu0 0.0
        %387 = vmatpush1.msra.mxu0 0.0
        %388 = vmatprep.subr.mxu0 0.0
        %389 = vmatpush1.msra.mxu0 0.0
        %390 = vmatprep.subr.mxu0 0.0
        %391 = vmatpush1.msra.mxu0 0.0
        %392 = vmatprep.subr.mxu0 0.0
        %393 = vmatpush1.msra.mxu0 0.0
        %394 = vmatprep.mubr.f32.mxu0 0.0
        %v395 = vand.u32 %v327, 4294901760
        %v396 = vsub.f32 %v327, %v395
        %v397 = vand.u32 %v396, 4294901760
        %v398 = vsub.f32 %v396, %v397
        %v399 = vand.u32 %v398, 4294901760
        %400 = vmatmul.mubr.f32.gmra.mrb[0].mxu0 %v399
        %v401 = vpop.f32.mrb[0].mxu0
        %v402 = vadd.f32 0.0, %v401
        %v403 = vpop.f32.mrb[0].mxu0
        %404 = vdwg.mxu0
        %405 = vmatprep.subr.mxu0 0.0
        %v406 = vand.u32 %v309, 4294901760
        %v407 = vsub.f32 %v309, %v406
        %v408 = vand.u32 %v407, 4294901760
        %v409 = vsub.f32 %v407, %v408
        %v410 = vand.u32 %v409, 4294901760
        %411 = vmatpush1.msra.mxu0 %v410
        %412 = vmatprep.subr.mxu0 0.0
        %413 = vmatpush1.msra.mxu0 0.0
        %414 = vmatprep.subr.mxu0 0.0
        %415 = vmatpush1.msra.mxu0 0.0
        %416 = vmatprep.subr.mxu0 0.0
        %417 = vmatpush1.msra.mxu0 0.0
        %418 = vmatprep.subr.mxu0 0.0
        %419 = vmatpush1.msra.mxu0 0.0
        %420 = vmatprep.subr.mxu0 0.0
        %421 = vmatpush1.msra.mxu0 0.0
        %422 = vmatprep.subr.mxu0 0.0
        %423 = vmatpush1.msra.mxu0 0.0
        %424 = vmatprep.subr.mxu0 0.0
        %425 = vmatpush1.msra.mxu0 0.0
        %426 = vmatprep.subr.mxu0 0.0
        %427 = vmatpush1.msra.mxu0 0.0
        %428 = vmatprep.subr.mxu0 0.0
        %429 = vmatpush1.msra.mxu0 0.0
        %430 = vmatprep.subr.mxu0 0.0
        %431 = vmatpush1.msra.mxu0 0.0
        %432 = vmatprep.subr.mxu0 0.0
        %433 = vmatpush1.msra.mxu0 0.0
        %434 = vmatprep.subr.mxu0 0.0
        %435 = vmatpush1.msra.mxu0 0.0
        %436 = vmatprep.subr.mxu0 0.0
        %437 = vmatpush1.msra.mxu0 0.0
        %438 = vmatprep.subr.mxu0 0.0
        %439 = vmatpush1.msra.mxu0 0.0
        %440 = vmatprep.subr.mxu0 0.0
        %441 = vmatpush1.msra.mxu0 0.0
        %442 = vmatprep.subr.mxu0 0.0
        %443 = vmatpush1.msra.mxu0 0.0
        %444 = vmatprep.subr.mxu0 0.0
        %445 = vmatpush1.msra.mxu0 0.0
        %446 = vmatprep.subr.mxu0 0.0
        %447 = vmatpush1.msra.mxu0 0.0
        %448 = vmatprep.subr.mxu0 0.0
        %449 = vmatpush1.msra.mxu0 0.0
        %450 = vmatprep.subr.mxu0 0.0
        %451 = vmatpush1.msra.mxu0 0.0
        %452 = vmatprep.subr.mxu0 0.0
        %453 = vmatpush1.msra.mxu0 0.0
        %454 = vmatprep.subr.mxu0 0.0
        %455 = vmatpush1.msra.mxu0 0.0
        %456 = vmatprep.subr.mxu0 0.0
        %457 = vmatpush1.msra.mxu0 0.0
        %458 = vmatprep.subr.mxu0 0.0
        %459 = vmatpush1.msra.mxu0 0.0
        %460 = vmatprep.subr.mxu0 0.0
        %461 = vmatpush1.msra.mxu0 0.0
        %462 = vmatprep.subr.mxu0 0.0
        %463 = vmatpush1.msra.mxu0 0.0
        %464 = vmatprep.subr.mxu0 0.0
        %465 = vmatpush1.msra.mxu0 0.0
        %466 = vmatprep.subr.mxu0 0.0
        %467 = vmatpush1.msra.mxu0 0.0
        %468 = vmatprep.subr.mxu0 0.0
        %469 = vmatpush1.msra.mxu0 0.0
        %470 = vmatprep.subr.mxu0 0.0
        %471 = vmatpush1.msra.mxu0 0.0
        %472 = vmatprep.subr.mxu0 0.0
        %473 = vmatpush1.msra.mxu0 0.0
        %474 = vmatprep.mubr.f32.mxu0 0.0
        %v475 = vand.u32 %v327, 4294901760
        %476 = vmatmul.mubr.f32.gmra.mrb[0].mxu0 %v475
        %v477 = vpop.f32.mrb[0].mxu0
        %v478 = vadd.f32 %v402, %v477
        %v479 = vpop.f32.mrb[0].mxu0
        %480 = vdwg.mxu0
        %481 = vmatprep.subr.mxu0 0.0
        %v482 = vand.u32 %v309, 4294901760
        %v483 = vsub.f32 %v309, %v482
        %484 = vmatpush1.msra.mxu0 %v483
        %485 = vmatprep.subr.mxu0 0.0
        %486 = vmatpush1.msra.mxu0 0.0
        %487 = vmatprep.subr.mxu0 0.0
        %488 = vmatpush1.msra.mxu0 0.0
        %489 = vmatprep.subr.mxu0 0.0
        %490 = vmatpush1.msra.mxu0 0.0
        %491 = vmatprep.subr.mxu0 0.0
        %492 = vmatpush1.msra.mxu0 0.0
        %493 = vmatprep.subr.mxu0 0.0
        %494 = vmatpush1.msra.mxu0 0.0
        %495 = vmatprep.subr.mxu0 0.0
        %496 = vmatpush1.msra.mxu0 0.0
        %497 = vmatprep.subr.mxu0 0.0
        %498 = vmatpush1.msra.mxu0 0.0
        %499 = vmatprep.subr.mxu0 0.0
        %500 = vmatpush1.msra.mxu0 0.0
        %501 = vmatprep.subr.mxu0 0.0
        %502 = vmatpush1.msra.mxu0 0.0
        %503 = vmatprep.subr.mxu0 0.0
        %504 = vmatpush1.msra.mxu0 0.0
        %505 = vmatprep.subr.mxu0 0.0
        %506 = vmatpush1.msra.mxu0 0.0
        %507 = vmatprep.subr.mxu0 0.0
        %508 = vmatpush1.msra.mxu0 0.0
        %509 = vmatprep.subr.mxu0 0.0
        %510 = vmatpush1.msra.mxu0 0.0
        %511 = vmatprep.subr.mxu0 0.0
        %512 = vmatpush1.msra.mxu0 0.0
        %513 = vmatprep.subr.mxu0 0.0
        %514 = vmatpush1.msra.mxu0 0.0
        %515 = vmatprep.subr.mxu0 0.0
        %516 = vmatpush1.msra.mxu0 0.0
        %517 = vmatprep.subr.mxu0 0.0
        %518 = vmatpush1.msra.mxu0 0.0
        %519 = vmatprep.subr.mxu0 0.0
        %520 = vmatpush1.msra.mxu0 0.0
        %521 = vmatprep.subr.mxu0 0.0
        %522 = vmatpush1.msra.mxu0 0.0
        %523 = vmatprep.subr.mxu0 0.0
        %524 = vmatpush1.msra.mxu0 0.0
        %525 = vmatprep.subr.mxu0 0.0
        %526 = vmatpush1.msra.mxu0 0.0
        %527 = vmatprep.subr.mxu0 0.0
        %528 = vmatpush1.msra.mxu0 0.0
        %529 = vmatprep.subr.mxu0 0.0
        %530 = vmatpush1.msra.mxu0 0.0
        %531 = vmatprep.subr.mxu0 0.0
        %532 = vmatpush1.msra.mxu0 0.0
        %533 = vmatprep.subr.mxu0 0.0
        %534 = vmatpush1.msra.mxu0 0.0
        %535 = vmatprep.subr.mxu0 0.0
        %536 = vmatpush1.msra.mxu0 0.0
        %537 = vmatprep.subr.mxu0 0.0
        %538 = vmatpush1.msra.mxu0 0.0
        %539 = vmatprep.subr.mxu0 0.0
        %540 = vmatpush1.msra.mxu0 0.0
        %541 = vmatprep.subr.mxu0 0.0
        %542 = vmatpush1.msra.mxu0 0.0
        %543 = vmatprep.subr.mxu0 0.0
        %544 = vmatpush1.msra.mxu0 0.0
        %545 = vmatprep.subr.mxu0 0.0
        %546 = vmatpush1.msra.mxu0 0.0
        %547 = vmatprep.mubr.f32.mxu0 0.0
        %v548 = vand.u32 %v327, 4294901760
        %v549 = vsub.f32 %v327, %v548
        %550 = vmatmul.mubr.f32.gmra.mrb[0].mxu0 %v549
        %v551 = vpop.f32.mrb[0].mxu0
        %v552 = vadd.f32 %v478, %v551
        %v553 = vpop.f32.mrb[0].mxu0
        %554 = vdwg.mxu0
        %555 = vmatprep.subr.mxu0 0.0
        %v556 = vand.u32 %v309, 4294901760
        %557 = vmatpush1.msra.mxu0 %v556
        %558 = vmatprep.subr.mxu0 0.0
        %559 = vmatpush1.msra.mxu0 0.0
        %560 = vmatprep.subr.mxu0 0.0
        %561 = vmatpush1.msra.mxu0 0.0
        %562 = vmatprep.subr.mxu0 0.0
        %563 = vmatpush1.msra.mxu0 0.0
        %564 = vmatprep.subr.mxu0 0.0
        %565 = vmatpush1.msra.mxu0 0.0
        %566 = vmatprep.subr.mxu0 0.0
        %567 = vmatpush1.msra.mxu0 0.0
        %568 = vmatprep.subr.mxu0 0.0
        %569 = vmatpush1.msra.mxu0 0.0
        %570 = vmatprep.subr.mxu0 0.0
        %571 = vmatpush1.msra.mxu0 0.0
        %572 = vmatprep.subr.mxu0 0.0
        %573 = vmatpush1.msra.mxu0 0.0
        %574 = vmatprep.subr.mxu0 0.0
        %575 = vmatpush1.msra.mxu0 0.0
        %576 = vmatprep.subr.mxu0 0.0
        %577 = vmatpush1.msra.mxu0 0.0
        %578 = vmatprep.subr.mxu0 0.0
        %579 = vmatpush1.msra.mxu0 0.0
        %580 = vmatprep.subr.mxu0 0.0
        %581 = vmatpush1.msra.mxu0 0.0
        %582 = vmatprep.subr.mxu0 0.0
        %583 = vmatpush1.msra.mxu0 0.0
        %584 = vmatprep.subr.mxu0 0.0
        %585 = vmatpush1.msra.mxu0 0.0
        %586 = vmatprep.subr.mxu0 0.0
        %587 = vmatpush1.msra.mxu0 0.0
        %588 = vmatprep.subr.mxu0 0.0
        %589 = vmatpush1.msra.mxu0 0.0
        %590 = vmatprep.subr.mxu0 0.0
        %591 = vmatpush1.msra.mxu0 0.0
        %592 = vmatprep.subr.mxu0 0.0
        %593 = vmatpush1.msra.mxu0 0.0
        %594 = vmatprep.subr.mxu0 0.0
        %595 = vmatpush1.msra.mxu0 0.0
        %596 = vmatprep.subr.mxu0 0.0
        %597 = vmatpush1.msra.mxu0 0.0
        %598 = vmatprep.subr.mxu0 0.0
        %599 = vmatpush1.msra.mxu0 0.0
        %600 = vmatprep.subr.mxu0 0.0
        %601 = vmatpush1.msra.mxu0 0.0
        %602 = vmatprep.subr.mxu0 0.0
        %603 = vmatpush1.msra.mxu0 0.0
        %604 = vmatprep.subr.mxu0 0.0
        %605 = vmatpush1.msra.mxu0 0.0
        %606 = vmatprep.subr.mxu0 0.0
        %607 = vmatpush1.msra.mxu0 0.0
        %608 = vmatprep.subr.mxu0 0.0
        %609 = vmatpush1.msra.mxu0 0.0
        %610 = vmatprep.subr.mxu0 0.0
        %611 = vmatpush1.msra.mxu0 0.0
        %612 = vmatprep.subr.mxu0 0.0
        %613 = vmatpush1.msra.mxu0 0.0
        %614 = vmatprep.subr.mxu0 0.0
        %615 = vmatpush1.msra.mxu0 0.0
        %616 = vmatprep.subr.mxu0 0.0
        %617 = vmatpush1.msra.mxu0 0.0
        %618 = vmatprep.subr.mxu0 0.0
        %619 = vmatpush1.msra.mxu0 0.0
        %620 = vmatprep.mubr.f32.mxu0 0.0
        %v621 = vand.u32 %v327, 4294901760
        %v622 = vsub.f32 %v327, %v621
        %v623 = vand.u32 %v622, 4294901760
        %624 = vmatmul.mubr.f32.gmra.mrb[0].mxu0 %v623
        %v625 = vpop.f32.mrb[0].mxu0
        %v626 = vadd.f32 %v552, %v625
        %v627 = vpop.f32.mrb[0].mxu0
        %628 = vdwg.mxu0
        %629 = vmatprep.subr.mxu0 0.0
        %v630 = vand.u32 %v309, 4294901760
        %v631 = vsub.f32 %v309, %v630
        %v632 = vand.u32 %v631, 4294901760
        %633 = vmatpush1.msra.mxu0 %v632
        %634 = vmatprep.subr.mxu0 0.0
        %635 = vmatpush1.msra.mxu0 0.0
        %636 = vmatprep.subr.mxu0 0.0
        %637 = vmatpush1.msra.mxu0 0.0
        %638 = vmatprep.subr.mxu0 0.0
        %639 = vmatpush1.msra.mxu0 0.0
        %640 = vmatprep.subr.mxu0 0.0
        %641 = vmatpush1.msra.mxu0 0.0
        %642 = vmatprep.subr.mxu0 0.0
        %643 = vmatpush1.msra.mxu0 0.0
        %644 = vmatprep.subr.mxu0 0.0
        %645 = vmatpush1.msra.mxu0 0.0
        %646 = vmatprep.subr.mxu0 0.0
        %647 = vmatpush1.msra.mxu0 0.0
        %648 = vmatprep.subr.mxu0 0.0
        %649 = vmatpush1.msra.mxu0 0.0
        %650 = vmatprep.subr.mxu0 0.0
        %651 = vmatpush1.msra.mxu0 0.0
        %652 = vmatprep.subr.mxu0 0.0
        %653 = vmatpush1.msra.mxu0 0.0
        %654 = vmatprep.subr.mxu0 0.0
        %655 = vmatpush1.msra.mxu0 0.0
        %656 = vmatprep.subr.mxu0 0.0
        %657 = vmatpush1.msra.mxu0 0.0
        %658 = vmatprep.subr.mxu0 0.0
        %659 = vmatpush1.msra.mxu0 0.0
        %660 = vmatprep.subr.mxu0 0.0
        %661 = vmatpush1.msra.mxu0 0.0
        %662 = vmatprep.subr.mxu0 0.0
        %663 = vmatpush1.msra.mxu0 0.0
        %664 = vmatprep.subr.mxu0 0.0
        %665 = vmatpush1.msra.mxu0 0.0
        %666 = vmatprep.subr.mxu0 0.0
        %667 = vmatpush1.msra.mxu0 0.0
        %668 = vmatprep.subr.mxu0 0.0
        %669 = vmatpush1.msra.mxu0 0.0
        %670 = vmatprep.subr.mxu0 0.0
        %671 = vmatpush1.msra.mxu0 0.0
        %672 = vmatprep.subr.mxu0 0.0
        %673 = vmatpush1.msra.mxu0 0.0
        %674 = vmatprep.subr.mxu0 0.0
        %675 = vmatpush1.msra.mxu0 0.0
        %676 = vmatprep.subr.mxu0 0.0
        %677 = vmatpush1.msra.mxu0 0.0
        %678 = vmatprep.subr.mxu0 0.0
        %679 = vmatpush1.msra.mxu0 0.0
        %680 = vmatprep.subr.mxu0 0.0
        %681 = vmatpush1.msra.mxu0 0.0
        %682 = vmatprep.subr.mxu0 0.0
        %683 = vmatpush1.msra.mxu0 0.0
        %684 = vmatprep.subr.mxu0 0.0
        %685 = vmatpush1.msra.mxu0 0.0
        %686 = vmatprep.subr.mxu0 0.0
        %687 = vmatpush1.msra.mxu0 0.0
        %688 = vmatprep.subr.mxu0 0.0
        %689 = vmatpush1.msra.mxu0 0.0
        %690 = vmatprep.subr.mxu0 0.0
        %691 = vmatpush1.msra.mxu0 0.0
        %692 = vmatprep.subr.mxu0 0.0
        %693 = vmatpush1.msra.mxu0 0.0
        %694 = vmatprep.subr.mxu0 0.0
        %695 = vmatpush1.msra.mxu0 0.0
        %696 = vmatprep.mubr.f32.mxu0 0.0
        %v697 = vand.u32 %v327, 4294901760
        %698 = vmatmul.mubr.f32.gmra.mrb[0].mxu0 %v697
        %v699 = vpop.f32.mrb[0].mxu0
        %v700 = vadd.f32 %v626, %v699
        %v701 = vpop.f32.mrb[0].mxu0
        %702 = vdwg.mxu0
        %703 = vmatprep.subr.mxu0 0.0
        %v704 = vand.u32 %v309, 4294901760
        %705 = vmatpush1.msra.mxu0 %v704
        %706 = vmatprep.subr.mxu0 0.0
        %707 = vmatpush1.msra.mxu0 0.0
        %708 = vmatprep.subr.mxu0 0.0
        %709 = vmatpush1.msra.mxu0 0.0
        %710 = vmatprep.subr.mxu0 0.0
        %711 = vmatpush1.msra.mxu0 0.0
        %712 = vmatprep.subr.mxu0 0.0
        %713 = vmatpush1.msra.mxu0 0.0
        %714 = vmatprep.subr.mxu0 0.0
        %715 = vmatpush1.msra.mxu0 0.0
        %716 = vmatprep.subr.mxu0 0.0
        %717 = vmatpush1.msra.mxu0 0.0
        %718 = vmatprep.subr.mxu0 0.0
        %719 = vmatpush1.msra.mxu0 0.0
        %720 = vmatprep.subr.mxu0 0.0
        %721 = vmatpush1.msra.mxu0 0.0
        %722 = vmatprep.subr.mxu0 0.0
        %723 = vmatpush1.msra.mxu0 0.0
        %724 = vmatprep.subr.mxu0 0.0
        %725 = vmatpush1.msra.mxu0 0.0
        %726 = vmatprep.subr.mxu0 0.0
        %727 = vmatpush1.msra.mxu0 0.0
        %728 = vmatprep.subr.mxu0 0.0
        %729 = vmatpush1.msra.mxu0 0.0
        %730 = vmatprep.subr.mxu0 0.0
        %731 = vmatpush1.msra.mxu0 0.0
        %732 = vmatprep.subr.mxu0 0.0
        %733 = vmatpush1.msra.mxu0 0.0
        %734 = vmatprep.subr.mxu0 0.0
        %735 = vmatpush1.msra.mxu0 0.0
        %736 = vmatprep.subr.mxu0 0.0
        %737 = vmatpush1.msra.mxu0 0.0
        %738 = vmatprep.subr.mxu0 0.0
        %739 = vmatpush1.msra.mxu0 0.0
        %740 = vmatprep.subr.mxu0 0.0
        %741 = vmatpush1.msra.mxu0 0.0
        %742 = vmatprep.subr.mxu0 0.0
        %743 = vmatpush1.msra.mxu0 0.0
        %744 = vmatprep.subr.mxu0 0.0
        %745 = vmatpush1.msra.mxu0 0.0
        %746 = vmatprep.subr.mxu0 0.0
        %747 = vmatpush1.msra.mxu0 0.0
        %748 = vmatprep.subr.mxu0 0.0
        %749 = vmatpush1.msra.mxu0 0.0
        %750 = vmatprep.subr.mxu0 0.0
        %751 = vmatpush1.msra.mxu0 0.0
        %752 = vmatprep.subr.mxu0 0.0
        %753 = vmatpush1.msra.mxu0 0.0
        %754 = vmatprep.subr.mxu0 0.0
        %755 = vmatpush1.msra.mxu0 0.0
        %756 = vmatprep.subr.mxu0 0.0
        %757 = vmatpush1.msra.mxu0 0.0
        %758 = vmatprep.subr.mxu0 0.0
        %759 = vmatpush1.msra.mxu0 0.0
        %760 = vmatprep.subr.mxu0 0.0
        %761 = vmatpush1.msra.mxu0 0.0
        %762 = vmatprep.subr.mxu0 0.0
        %763 = vmatpush1.msra.mxu0 0.0
        %764 = vmatprep.subr.mxu0 0.0
        %765 = vmatpush1.msra.mxu0 0.0
        %766 = vmatprep.subr.mxu0 0.0
        %767 = vmatpush1.msra.mxu0 0.0
        %768 = vmatprep.mubr.f32.mxu0 0.0
        %v769 = vand.u32 %v327, 4294901760
        %770 = vmatmul.mubr.f32.gmra.mrb[0].mxu0 %v769
        %v771 = vpop.f32.mrb[0].mxu0
        %v772 = vadd.f32 %v700, %v771
        %v773 = vpop.f32.mrb[0].mxu0
        %774 = vdwg.mxu0
        %v776 = vsel %vm325, %v310, 0
        %778 = vmatprep.subr.mxu0 0.0
        %v779 = vand.u32 %v306, 4294901760
        %780 = vmatpush1.msra.mxu0 %v779
        %781 = vmatprep.subr.mxu0 0.0
        %782 = vmatpush1.msra.mxu0 0.0
        %783 = vmatprep.subr.mxu0 0.0
        %784 = vmatpush1.msra.mxu0 0.0
        %785 = vmatprep.subr.mxu0 0.0
        %786 = vmatpush1.msra.mxu0 0.0
        %787 = vmatprep.subr.mxu0 0.0
        %788 = vmatpush1.msra.mxu0 0.0
        %789 = vmatprep.subr.mxu0 0.0
        %790 = vmatpush1.msra.mxu0 0.0
        %791 = vmatprep.subr.mxu0 0.0
        %792 = vmatpush1.msra.mxu0 0.0
        %793 = vmatprep.subr.mxu0 0.0
        %794 = vmatpush1.msra.mxu0 0.0
        %795 = vmatprep.subr.mxu0 0.0
        %796 = vmatpush1.msra.mxu0 0.0
        %797 = vmatprep.subr.mxu0 0.0
        %798 = vmatpush1.msra.mxu0 0.0
        %799 = vmatprep.subr.mxu0 0.0
        %800 = vmatpush1.msra.mxu0 0.0
        %801 = vmatprep.subr.mxu0 0.0
        %802 = vmatpush1.msra.mxu0 0.0
        %803 = vmatprep.subr.mxu0 0.0
        %804 = vmatpush1.msra.mxu0 0.0
        %805 = vmatprep.subr.mxu0 0.0
        %806 = vmatpush1.msra.mxu0 0.0
        %807 = vmatprep.subr.mxu0 0.0
        %808 = vmatpush1.msra.mxu0 0.0
        %809 = vmatprep.subr.mxu0 0.0
        %810 = vmatpush1.msra.mxu0 0.0
        %811 = vmatprep.subr.mxu0 0.0
        %812 = vmatpush1.msra.mxu0 0.0
        %813 = vmatprep.subr.mxu0 0.0
        %814 = vmatpush1.msra.mxu0 0.0
        %815 = vmatprep.subr.mxu0 0.0
        %816 = vmatpush1.msra.mxu0 0.0
        %817 = vmatprep.subr.mxu0 0.0
        %818 = vmatpush1.msra.mxu0 0.0
        %819 = vmatprep.subr.mxu0 0.0
        %820 = vmatpush1.msra.mxu0 0.0
        %821 = vmatprep.subr.mxu0 0.0
        %822 = vmatpush1.msra.mxu0 0.0
        %823 = vmatprep.subr.mxu0 0.0
        %824 = vmatpush1.msra.mxu0 0.0
        %825 = vmatprep.subr.mxu0 0.0
        %826 = vmatpush1.msra.mxu0 0.0
        %827 = vmatprep.subr.mxu0 0.0
        %828 = vmatpush1.msra.mxu0 0.0
        %829 = vmatprep.subr.mxu0 0.0
        %830 = vmatpush1.msra.mxu0 0.0
        %831 = vmatprep.subr.mxu0 0.0
        %832 = vmatpush1.msra.mxu0 0.0
        %833 = vmatprep.subr.mxu0 0.0
        %834 = vmatpush1.msra.mxu0 0.0
        %835 = vmatprep.subr.mxu0 0.0
        %836 = vmatpush1.msra.mxu0 0.0
        %837 = vmatprep.subr.mxu0 0.0
        %838 = vmatpush1.msra.mxu0 0.0
        %839 = vmatprep.subr.mxu0 0.0
        %840 = vmatpush1.msra.mxu0 0.0
        %841 = vmatprep.subr.mxu0 0.0
        %842 = vmatpush1.msra.mxu0 0.0
        %843 = vmatprep.mubr.f32.mxu0 0.0
        %v844 = vand.u32 %v776, 4294901760
        %v845 = vsub.f32 %v776, %v844
        %v846 = vand.u32 %v845, 4294901760
        %v847 = vsub.f32 %v845, %v846
        %v848 = vand.u32 %v847, 4294901760
        %849 = vmatmul.mubr.f32.gmra.mrb[0].mxu0 %v848
        %v850 = vpop.f32.mrb[0].mxu0
        %v851 = vadd.f32 %v772, %v850
        %v852 = vpop.f32.mrb[0].mxu0
        %853 = vdwg.mxu0
        %854 = vmatprep.subr.mxu0 0.0
        %v855 = vand.u32 %v306, 4294901760
        %v856 = vsub.f32 %v306, %v855
        %v857 = vand.u32 %v856, 4294901760
        %v858 = vsub.f32 %v856, %v857
        %v859 = vand.u32 %v858, 4294901760
        %860 = vmatpush1.msra.mxu0 %v859
        %861 = vmatprep.subr.mxu0 0.0
        %862 = vmatpush1.msra.mxu0 0.0
        %863 = vmatprep.subr.mxu0 0.0
        %864 = vmatpush1.msra.mxu0 0.0
        %865 = vmatprep.subr.mxu0 0.0
        %866 = vmatpush1.msra.mxu0 0.0
        %867 = vmatprep.subr.mxu0 0.0
        %868 = vmatpush1.msra.mxu0 0.0
        %869 = vmatprep.subr.mxu0 0.0
        %870 = vmatpush1.msra.mxu0 0.0
        %871 = vmatprep.subr.mxu0 0.0
        %872 = vmatpush1.msra.mxu0 0.0
        %873 = vmatprep.subr.mxu0 0.0
        %874 = vmatpush1.msra.mxu0 0.0
        %875 = vmatprep.subr.mxu0 0.0
        %876 = vmatpush1.msra.mxu0 0.0
        %877 = vmatprep.subr.mxu0 0.0
        %878 = vmatpush1.msra.mxu0 0.0
        %879 = vmatprep.subr.mxu0 0.0
        %880 = vmatpush1.msra.mxu0 0.0
        %881 = vmatprep.subr.mxu0 0.0
        %882 = vmatpush1.msra.mxu0 0.0
        %883 = vmatprep.subr.mxu0 0.0
        %884 = vmatpush1.msra.mxu0 0.0
        %885 = vmatprep.subr.mxu0 0.0
        %886 = vmatpush1.msra.mxu0 0.0
        %887 = vmatprep.subr.mxu0 0.0
        %888 = vmatpush1.msra.mxu0 0.0
        %889 = vmatprep.subr.mxu0 0.0
        %890 = vmatpush1.msra.mxu0 0.0
        %891 = vmatprep.subr.mxu0 0.0
        %892 = vmatpush1.msra.mxu0 0.0
        %893 = vmatprep.subr.mxu0 0.0
        %894 = vmatpush1.msra.mxu0 0.0
        %895 = vmatprep.subr.mxu0 0.0
        %896 = vmatpush1.msra.mxu0 0.0
        %897 = vmatprep.subr.mxu0 0.0
        %898 = vmatpush1.msra.mxu0 0.0
        %899 = vmatprep.subr.mxu0 0.0
        %900 = vmatpush1.msra.mxu0 0.0
        %901 = vmatprep.subr.mxu0 0.0
        %902 = vmatpush1.msra.mxu0 0.0
        %903 = vmatprep.subr.mxu0 0.0
        %904 = vmatpush1.msra.mxu0 0.0
        %905 = vmatprep.subr.mxu0 0.0
        %906 = vmatpush1.msra.mxu0 0.0
        %907 = vmatprep.subr.mxu0 0.0
        %908 = vmatpush1.msra.mxu0 0.0
        %909 = vmatprep.subr.mxu0 0.0
        %910 = vmatpush1.msra.mxu0 0.0
        %911 = vmatprep.subr.mxu0 0.0
        %912 = vmatpush1.msra.mxu0 0.0
        %913 = vmatprep.subr.mxu0 0.0
        %914 = vmatpush1.msra.mxu0 0.0
        %915 = vmatprep.subr.mxu0 0.0
        %916 = vmatpush1.msra.mxu0 0.0
        %917 = vmatprep.subr.mxu0 0.0
        %918 = vmatpush1.msra.mxu0 0.0
        %919 = vmatprep.subr.mxu0 0.0
        %920 = vmatpush1.msra.mxu0 0.0
        %921 = vmatprep.subr.mxu0 0.0
        %922 = vmatpush1.msra.mxu0 0.0
        %923 = vmatprep.mubr.f32.mxu0 0.0
        %v924 = vand.u32 %v776, 4294901760
        %925 = vmatmul.mubr.f32.gmra.mrb[0].mxu0 %v924
        %v926 = vpop.f32.mrb[0].mxu0
        %v927 = vadd.f32 %v851, %v926
        %v928 = vpop.f32.mrb[0].mxu0
        %929 = vdwg.mxu0
        %930 = vmatprep.subr.mxu0 0.0
        %v931 = vand.u32 %v306, 4294901760
        %v932 = vsub.f32 %v306, %v931
        %933 = vmatpush1.msra.mxu0 %v932
        %934 = vmatprep.subr.mxu0 0.0
        %935 = vmatpush1.msra.mxu0 0.0
        %936 = vmatprep.subr.mxu0 0.0
        %937 = vmatpush1.msra.mxu0 0.0
        %938 = vmatprep.subr.mxu0 0.0
        %939 = vmatpush1.msra.mxu0 0.0
        %940 = vmatprep.subr.mxu0 0.0
        %941 = vmatpush1.msra.mxu0 0.0
        %942 = vmatprep.subr.mxu0 0.0
        %943 = vmatpush1.msra.mxu0 0.0
        %944 = vmatprep.subr.mxu0 0.0
        %945 = vmatpush1.msra.mxu0 0.0
        %946 = vmatprep.subr.mxu0 0.0
        %947 = vmatpush1.msra.mxu0 0.0
        %948 = vmatprep.subr.mxu0 0.0
        %949 = vmatpush1.msra.mxu0 0.0
        %950 = vmatprep.subr.mxu0 0.0
        %951 = vmatpush1.msra.mxu0 0.0
        %952 = vmatprep.subr.mxu0 0.0
        %953 = vmatpush1.msra.mxu0 0.0
        %954 = vmatprep.subr.mxu0 0.0
        %955 = vmatpush1.msra.mxu0 0.0
        %956 = vmatprep.subr.mxu0 0.0
        %957 = vmatpush1.msra.mxu0 0.0
        %958 = vmatprep.subr.mxu0 0.0
        %959 = vmatpush1.msra.mxu0 0.0
        %960 = vmatprep.subr.mxu0 0.0
        %961 = vmatpush1.msra.mxu0 0.0
        %962 = vmatprep.subr.mxu0 0.0
        %963 = vmatpush1.msra.mxu0 0.0
        %964 = vmatprep.subr.mxu0 0.0
        %965 = vmatpush1.msra.mxu0 0.0
        %966 = vmatprep.subr.mxu0 0.0
        %967 = vmatpush1.msra.mxu0 0.0
        %968 = vmatprep.subr.mxu0 0.0
        %969 = vmatpush1.msra.mxu0 0.0
        %970 = vmatprep.subr.mxu0 0.0
        %971 = vmatpush1.msra.mxu0 0.0
        %972 = vmatprep.subr.mxu0 0.0
        %973 = vmatpush1.msra.mxu0 0.0
        %974 = vmatprep.subr.mxu0 0.0
        %975 = vmatpush1.msra.mxu0 0.0
        %976 = vmatprep.subr.mxu0 0.0
        %977 = vmatpush1.msra.mxu0 0.0
        %978 = vmatprep.subr.mxu0 0.0
        %979 = vmatpush1.msra.mxu0 0.0
        %980 = vmatprep.subr.mxu0 0.0
        %981 = vmatpush1.msra.mxu0 0.0
        %982 = vmatprep.subr.mxu0 0.0
        %983 = vmatpush1.msra.mxu0 0.0
        %984 = vmatprep.subr.mxu0 0.0
        %985 = vmatpush1.msra.mxu0 0.0
        %986 = vmatprep.subr.mxu0 0.0
        %987 = vmatpush1.msra.mxu0 0.0
        %988 = vmatprep.subr.mxu0 0.0
        %989 = vmatpush1.msra.mxu0 0.0
        %990 = vmatprep.subr.mxu0 0.0
        %991 = vmatpush1.msra.mxu0 0.0
        %992 = vmatprep.subr.mxu0 0.0
        %993 = vmatpush1.msra.mxu0 0.0
        %994 = vmatprep.subr.mxu0 0.0
        %995 = vmatpush1.msra.mxu0 0.0
        %996 = vmatprep.mubr.f32.mxu0 0.0
        %v997 = vand.u32 %v776, 4294901760
        %v998 = vsub.f32 %v776, %v997
        %999 = vmatmul.mubr.f32.gmra.mrb[0].mxu0 %v998
        %v1000 = vpop.f32.mrb[0].mxu0
        %v1001 = vadd.f32 %v927, %v1000
        %v1002 = vpop.f32.mrb[0].mxu0
        %1003 = vdwg.mxu0
        %1004 = vmatprep.subr.mxu0 0.0
        %v1005 = vand.u32 %v306, 4294901760
        %1006 = vmatpush1.msra.mxu0 %v1005
        %1007 = vmatprep.subr.mxu0 0.0
        %1008 = vmatpush1.msra.mxu0 0.0
        %1009 = vmatprep.subr.mxu0 0.0
        %1010 = vmatpush1.msra.mxu0 0.0
        %1011 = vmatprep.subr.mxu0 0.0
        %1012 = vmatpush1.msra.mxu0 0.0
        %1013 = vmatprep.subr.mxu0 0.0
        %1014 = vmatpush1.msra.mxu0 0.0
        %1015 = vmatprep.subr.mxu0 0.0
        %1016 = vmatpush1.msra.mxu0 0.0
        %1017 = vmatprep.subr.mxu0 0.0
        %1018 = vmatpush1.msra.mxu0 0.0
        %1019 = vmatprep.subr.mxu0 0.0
        %1020 = vmatpush1.msra.mxu0 0.0
        %1021 = vmatprep.subr.mxu0 0.0
        %1022 = vmatpush1.msra.mxu0 0.0
        %1023 = vmatprep.subr.mxu0 0.0
        %1024 = vmatpush1.msra.mxu0 0.0
        %1025 = vmatprep.subr.mxu0 0.0
        %1026 = vmatpush1.msra.mxu0 0.0
        %1027 = vmatprep.subr.mxu0 0.0
        %1028 = vmatpush1.msra.mxu0 0.0
        %1029 = vmatprep.subr.mxu0 0.0
        %1030 = vmatpush1.msra.mxu0 0.0
        %1031 = vmatprep.subr.mxu0 0.0
        %1032 = vmatpush1.msra.mxu0 0.0
        %1033 = vmatprep.subr.mxu0 0.0
        %1034 = vmatpush1.msra.mxu0 0.0
        %1035 = vmatprep.subr.mxu0 0.0
        %1036 = vmatpush1.msra.mxu0 0.0
        %1037 = vmatprep.subr.mxu0 0.0
        %1038 = vmatpush1.msra.mxu0 0.0
        %1039 = vmatprep.subr.mxu0 0.0
        %1040 = vmatpush1.msra.mxu0 0.0
        %1041 = vmatprep.subr.mxu0 0.0
        %1042 = vmatpush1.msra.mxu0 0.0
        %1043 = vmatprep.subr.mxu0 0.0
        %1044 = vmatpush1.msra.mxu0 0.0
        %1045 = vmatprep.subr.mxu0 0.0
        %1046 = vmatpush1.msra.mxu0 0.0
        %1047 = vmatprep.subr.mxu0 0.0
        %1048 = vmatpush1.msra.mxu0 0.0
        %1049 = vmatprep.subr.mxu0 0.0
        %1050 = vmatpush1.msra.mxu0 0.0
        %1051 = vmatprep.subr.mxu0 0.0
        %1052 = vmatpush1.msra.mxu0 0.0
        %1053 = vmatprep.subr.mxu0 0.0
        %1054 = vmatpush1.msra.mxu0 0.0
        %1055 = vmatprep.subr.mxu0 0.0
        %1056 = vmatpush1.msra.mxu0 0.0
        %1057 = vmatprep.subr.mxu0 0.0
        %1058 = vmatpush1.msra.mxu0 0.0
        %1059 = vmatprep.subr.mxu0 0.0
        %1060 = vmatpush1.msra.mxu0 0.0
        %1061 = vmatprep.subr.mxu0 0.0
        %1062 = vmatpush1.msra.mxu0 0.0
        %1063 = vmatprep.subr.mxu0 0.0
        %1064 = vmatpush1.msra.mxu0 0.0
        %1065 = vmatprep.subr.mxu0 0.0
        %1066 = vmatpush1.msra.mxu0 0.0
        %1067 = vmatprep.subr.mxu0 0.0
        %1068 = vmatpush1.msra.mxu0 0.0
        %1069 = vmatprep.mubr.f32.mxu0 0.0
        %v1070 = vand.u32 %v776, 4294901760
        %v1071 = vsub.f32 %v776, %v1070
        %v1072 = vand.u32 %v1071, 4294901760
        %1073 = vmatmul.mubr.f32.gmra.mrb[0].mxu0 %v1072
        %v1074 = vpop.f32.mrb[0].mxu0
        %v1075 = vadd.f32 %v1001, %v1074
        %v1076 = vpop.f32.mrb[0].mxu0
        %1077 = vdwg.mxu0
        %1078 = vmatprep.subr.mxu0 0.0
        %v1079 = vand.u32 %v306, 4294901760
        %v1080 = vsub.f32 %v306, %v1079
        %v1081 = vand.u32 %v1080, 4294901760
        %1082 = vmatpush1.msra.mxu0 %v1081
        %1083 = vmatprep.subr.mxu0 0.0
        %1084 = vmatpush1.msra.mxu0 0.0
        %1085 = vmatprep.subr.mxu0 0.0
        %1086 = vmatpush1.msra.mxu0 0.0
        %1087 = vmatprep.subr.mxu0 0.0
        %1088 = vmatpush1.msra.mxu0 0.0
        %1089 = vmatprep.subr.mxu0 0.0
        %1090 = vmatpush1.msra.mxu0 0.0
        %1091 = vmatprep.subr.mxu0 0.0
        %1092 = vmatpush1.msra.mxu0 0.0
        %1093 = vmatprep.subr.mxu0 0.0
        %1094 = vmatpush1.msra.mxu0 0.0
        %1095 = vmatprep.subr.mxu0 0.0
        %1096 = vmatpush1.msra.mxu0 0.0
        %1097 = vmatprep.subr.mxu0 0.0
        %1098 = vmatpush1.msra.mxu0 0.0
        %1099 = vmatprep.subr.mxu0 0.0
        %1100 = vmatpush1.msra.mxu0 0.0
        %1101 = vmatprep.subr.mxu0 0.0
        %1102 = vmatpush1.msra.mxu0 0.0
        %1103 = vmatprep.subr.mxu0 0.0
        %1104 = vmatpush1.msra.mxu0 0.0
        %1105 = vmatprep.subr.mxu0 0.0
        %1106 = vmatpush1.msra.mxu0 0.0
        %1107 = vmatprep.subr.mxu0 0.0
        %1108 = vmatpush1.msra.mxu0 0.0
        %1109 = vmatprep.subr.mxu0 0.0
        %1110 = vmatpush1.msra.mxu0 0.0
        %1111 = vmatprep.subr.mxu0 0.0
        %1112 = vmatpush1.msra.mxu0 0.0
        %1113 = vmatprep.subr.mxu0 0.0
        %1114 = vmatpush1.msra.mxu0 0.0
        %1115 = vmatprep.subr.mxu0 0.0
        %1116 = vmatpush1.msra.mxu0 0.0
        %1117 = vmatprep.subr.mxu0 0.0
        %1118 = vmatpush1.msra.mxu0 0.0
        %1119 = vmatprep.subr.mxu0 0.0
        %1120 = vmatpush1.msra.mxu0 0.0
        %1121 = vmatprep.subr.mxu0 0.0
        %1122 = vmatpush1.msra.mxu0 0.0
        %1123 = vmatprep.subr.mxu0 0.0
        %1124 = vmatpush1.msra.mxu0 0.0
        %1125 = vmatprep.subr.mxu0 0.0
        %1126 = vmatpush1.msra.mxu0 0.0
        %1127 = vmatprep.subr.mxu0 0.0
        %1128 = vmatpush1.msra.mxu0 0.0
        %1129 = vmatprep.subr.mxu0 0.0
        %1130 = vmatpush1.msra.mxu0 0.0
        %1131 = vmatprep.subr.mxu0 0.0
        %1132 = vmatpush1.msra.mxu0 0.0
        %1133 = vmatprep.subr.mxu0 0.0
        %1134 = vmatpush1.msra.mxu0 0.0
        %1135 = vmatprep.subr.mxu0 0.0
        %1136 = vmatpush1.msra.mxu0 0.0
        %1137 = vmatprep.subr.mxu0 0.0
        %1138 = vmatpush1.msra.mxu0 0.0
        %1139 = vmatprep.subr.mxu0 0.0
        %1140 = vmatpush1.msra.mxu0 0.0
        %1141 = vmatprep.subr.mxu0 0.0
        %1142 = vmatpush1.msra.mxu0 0.0
        %1143 = vmatprep.subr.mxu0 0.0
        %1144 = vmatpush1.msra.mxu0 0.0
        %1145 = vmatprep.mubr.f32.mxu0 0.0
        %v1146 = vand.u32 %v776, 4294901760
        %1147 = vmatmul.mubr.f32.gmra.mrb[0].mxu0 %v1146
        %v1148 = vpop.f32.mrb[0].mxu0
        %v1149 = vadd.f32 %v1075, %v1148
        %v1150 = vpop.f32.mrb[0].mxu0
        %1151 = vdwg.mxu0
        %1152 = vmatprep.subr.mxu0 0.0
        %v1153 = vand.u32 %v306, 4294901760
        %1154 = vmatpush1.msra.mxu0 %v1153
        %1155 = vmatprep.subr.mxu0 0.0
        %1156 = vmatpush1.msra.mxu0 0.0
        %1157 = vmatprep.subr.mxu0 0.0
        %1158 = vmatpush1.msra.mxu0 0.0
        %1159 = vmatprep.subr.mxu0 0.0
        %1160 = vmatpush1.msra.mxu0 0.0
        %1161 = vmatprep.subr.mxu0 0.0
        %1162 = vmatpush1.msra.mxu0 0.0
        %1163 = vmatprep.subr.mxu0 0.0
        %1164 = vmatpush1.msra.mxu0 0.0
        %1165 = vmatprep.subr.mxu0 0.0
        %1166 = vmatpush1.msra.mxu0 0.0
        %1167 = vmatprep.subr.mxu0 0.0
        %1168 = vmatpush1.msra.mxu0 0.0
        %1169 = vmatprep.subr.mxu0 0.0
        %1170 = vmatpush1.msra.mxu0 0.0
        %1171 = vmatprep.subr.mxu0 0.0
        %1172 = vmatpush1.msra.mxu0 0.0
        %1173 = vmatprep.subr.mxu0 0.0
        %1174 = vmatpush1.msra.mxu0 0.0
        %1175 = vmatprep.subr.mxu0 0.0
        %1176 = vmatpush1.msra.mxu0 0.0
        %1177 = vmatprep.subr.mxu0 0.0
        %1178 = vmatpush1.msra.mxu0 0.0
        %1179 = vmatprep.subr.mxu0 0.0
        %1180 = vmatpush1.msra.mxu0 0.0
        %1181 = vmatprep.subr.mxu0 0.0
        %1182 = vmatpush1.msra.mxu0 0.0
        %1183 = vmatprep.subr.mxu0 0.0
        %1184 = vmatpush1.msra.mxu0 0.0
        %1185 = vmatprep.subr.mxu0 0.0
        %1186 = vmatpush1.msra.mxu0 0.0
        %1187 = vmatprep.subr.mxu0 0.0
        %1188 = vmatpush1.msra.mxu0 0.0
        %1189 = vmatprep.subr.mxu0 0.0
        %1190 = vmatpush1.msra.mxu0 0.0
        %1191 = vmatprep.subr.mxu0 0.0
        %1192 = vmatpush1.msra.mxu0 0.0
        %1193 = vmatprep.subr.mxu0 0.0
        %1194 = vmatpush1.msra.mxu0 0.0
        %1195 = vmatprep.subr.mxu0 0.0
        %1196 = vmatpush1.msra.mxu0 0.0
        %1197 = vmatprep.subr.mxu0 0.0
        %1198 = vmatpush1.msra.mxu0 0.0
        %1199 = vmatprep.subr.mxu0 0.0
        %1200 = vmatpush1.msra.mxu0 0.0
        %1201 = vmatprep.subr.mxu0 0.0
        %1202 = vmatpush1.msra.mxu0 0.0
        %1203 = vmatprep.subr.mxu0 0.0
        %1204 = vmatpush1.msra.mxu0 0.0
        %1205 = vmatprep.subr.mxu0 0.0
        %1206 = vmatpush1.msra.mxu0 0.0
        %1207 = vmatprep.subr.mxu0 0.0
        %1208 = vmatpush1.msra.mxu0 0.0
        %1209 = vmatprep.subr.mxu0 0.0
        %1210 = vmatpush1.msra.mxu0 0.0
        %1211 = vmatprep.subr.mxu0 0.0
        %1212 = vmatpush1.msra.mxu0 0.0
        %1213 = vmatprep.subr.mxu0 0.0
        %1214 = vmatpush1.msra.mxu0 0.0
        %1215 = vmatprep.subr.mxu0 0.0
        %1216 = vmatpush1.msra.mxu0 0.0
        %1217 = vmatprep.mubr.f32.mxu0 0.0
        %v1218 = vand.u32 %v776, 4294901760
        %1219 = vmatmul.mubr.f32.gmra.mrb[0].mxu0 %v1218
        %v1220 = vpop.f32.mrb[0].mxu0
        %v1221 = vadd.f32 %v1149, %v1220
        %v1222 = vpop.f32.mrb[0].mxu0
        %1223 = vdwg.mxu0
        %1225 = vset.pattern.permute.xlu0 0
        %1226 = vperm.xlu0 %1225, %v313
        %v1227 = vpop.permute.xlu0 %1226
        %v1229 = vadd.f32 %v1221, %v1227
        %v1230 = vmax.f32 %v1229, 0.0
        %1232 = vset.pattern.permute.xlu0 0
        %1233 = vperm.xlu0 %1232, %v314
        %v1234 = vpop.permute.xlu0 %1233
        %v1237 = vsel %vm325, %v312, 0
        %1239 = vmatprep.subr.mxu0 0.0
        %v1240 = vand.u32 %v1230, 4294901760
        %1241 = vmatpush1.msra.mxu0 %v1240
        %1242 = vmatprep.subr.mxu0 0.0
        %1243 = vmatpush1.msra.mxu0 0.0
        %1244 = vmatprep.subr.mxu0 0.0
        %1245 = vmatpush1.msra.mxu0 0.0
        %1246 = vmatprep.subr.mxu0 0.0
        %1247 = vmatpush1.msra.mxu0 0.0
        %1248 = vmatprep.subr.mxu0 0.0
        %1249 = vmatpush1.msra.mxu0 0.0
        %1250 = vmatprep.subr.mxu0 0.0
        %1251 = vmatpush1.msra.mxu0 0.0
        %1252 = vmatprep.subr.mxu0 0.0
        %1253 = vmatpush1.msra.mxu0 0.0
        %1254 = vmatprep.subr.mxu0 0.0
        %1255 = vmatpush1.msra.mxu0 0.0
        %1256 = vmatprep.subr.mxu0 0.0
        %1257 = vmatpush1.msra.mxu0 0.0
        %1258 = vmatprep.subr.mxu0 0.0
        %1259 = vmatpush1.msra.mxu0 0.0
        %1260 = vmatprep.subr.mxu0 0.0
        %1261 = vmatpush1.msra.mxu0 0.0
        %1262 = vmatprep.subr.mxu0 0.0
        %1263 = vmatpush1.msra.mxu0 0.0
        %1264 = vmatprep.subr.mxu0 0.0
        %1265 = vmatpush1.msra.mxu0 0.0
        %1266 = vmatprep.subr.mxu0 0.0
        %1267 = vmatpush1.msra.mxu0 0.0
        %1268 = vmatprep.subr.mxu0 0.0
        %1269 = vmatpush1.msra.mxu0 0.0
        %1270 = vmatprep.subr.mxu0 0.0
        %1271 = vmatpush1.msra.mxu0 0.0
        %1272 = vmatprep.subr.mxu0 0.0
        %1273 = vmatpush1.msra.mxu0 0.0
        %1274 = vmatprep.subr.mxu0 0.0
        %1275 = vmatpush1.msra.mxu0 0.0
        %1276 = vmatprep.subr.mxu0 0.0
        %1277 = vmatpush1.msra.mxu0 0.0
        %1278 = vmatprep.subr.mxu0 0.0
        %1279 = vmatpush1.msra.mxu0 0.0
        %1280 = vmatprep.subr.mxu0 0.0
        %1281 = vmatpush1.msra.mxu0 0.0
        %1282 = vmatprep.subr.mxu0 0.0
        %1283 = vmatpush1.msra.mxu0 0.0
        %1284 = vmatprep.subr.mxu0 0.0
        %1285 = vmatpush1.msra.mxu0 0.0
        %1286 = vmatprep.subr.mxu0 0.0
        %1287 = vmatpush1.msra.mxu0 0.0
        %1288 = vmatprep.subr.mxu0 0.0
        %1289 = vmatpush1.msra.mxu0 0.0
        %1290 = vmatprep.subr.mxu0 0.0
        %1291 = vmatpush1.msra.mxu0 0.0
        %1292 = vmatprep.subr.mxu0 0.0
        %1293 = vmatpush1.msra.mxu0 0.0
        %1294 = vmatprep.subr.mxu0 0.0
        %1295 = vmatpush1.msra.mxu0 0.0
        %1296 = vmatprep.subr.mxu0 0.0
        %1297 = vmatpush1.msra.mxu0 0.0
        %1298 = vmatprep.subr.mxu0 0.0
        %1299 = vmatpush1.msra.mxu0 0.0
        %1300 = vmatprep.subr.mxu0 0.0
        %1301 = vmatpush1.msra.mxu0 0.0
        %1302 = vmatprep.subr.mxu0 0.0
        %1303 = vmatpush1.msra.mxu0 0.0
        %1304 = vmatprep.mubr.f32.mxu0 0.0
        %v1305 = vand.u32 %v1237, 4294901760
        %v1306 = vsub.f32 %v1237, %v1305
        %v1307 = vand.u32 %v1306, 4294901760
        %v1308 = vsub.f32 %v1306, %v1307
        %v1309 = vand.u32 %v1308, 4294901760
        %1310 = vmatmul.mubr.f32.gmra.mrb[0].mxu0 %v1309
        %v1311 = vpop.f32.mrb[0].mxu0
        %v1312 = vadd.f32 %v1234, %v1311
        %v1313 = vpop.f32.mrb[0].mxu0
        %1314 = vdwg.mxu0
        %1315 = vmatprep.subr.mxu0 0.0
        %v1316 = vand.u32 %v1230, 4294901760
        %v1317 = vsub.f32 %v1230, %v1316
        %v1318 = vand.u32 %v1317, 4294901760
        %v1319 = vsub.f32 %v1317, %v1318
        %v1320 = vand.u32 %v1319, 4294901760
        %1321 = vmatpush1.msra.mxu0 %v1320
        %1322 = vmatprep.subr.mxu0 0.0
        %1323 = vmatpush1.msra.mxu0 0.0
        %1324 = vmatprep.subr.mxu0 0.0
        %1325 = vmatpush1.msra.mxu0 0.0
        %1326 = vmatprep.subr.mxu0 0.0
        %1327 = vmatpush1.msra.mxu0 0.0
        %1328 = vmatprep.subr.mxu0 0.0
        %1329 = vmatpush1.msra.mxu0 0.0
        %1330 = vmatprep.subr.mxu0 0.0
        %1331 = vmatpush1.msra.mxu0 0.0
        %1332 = vmatprep.subr.mxu0 0.0
        %1333 = vmatpush1.msra.mxu0 0.0
        %1334 = vmatprep.subr.mxu0 0.0
        %1335 = vmatpush1.msra.mxu0 0.0
        %1336 = vmatprep.subr.mxu0 0.0
        %1337 = vmatpush1.msra.mxu0 0.0
        %1338 = vmatprep.subr.mxu0 0.0
        %1339 = vmatpush1.msra.mxu0 0.0
        %1340 = vmatprep.subr.mxu0 0.0
        %1341 = vmatpush1.msra.mxu0 0.0
        %1342 = vmatprep.subr.mxu0 0.0
        %1343 = vmatpush1.msra.mxu0 0.0
        %1344 = vmatprep.subr.mxu0 0.0
        %1345 = vmatpush1.msra.mxu0 0.0
        %1346 = vmatprep.subr.mxu0 0.0
        %1347 = vmatpush1.msra.mxu0 0.0
        %1348 = vmatprep.subr.mxu0 0.0
        %1349 = vmatpush1.msra.mxu0 0.0
        %1350 = vmatprep.subr.mxu0 0.0
        %1351 = vmatpush1.msra.mxu0 0.0
        %1352 = vmatprep.subr.mxu0 0.0
        %1353 = vmatpush1.msra.mxu0 0.0
        %1354 = vmatprep.subr.mxu0 0.0
        %1355 = vmatpush1.msra.mxu0 0.0
        %1356 = vmatprep.subr.mxu0 0.0
        %1357 = vmatpush1.msra.mxu0 0.0
        %1358 = vmatprep.subr.mxu0 0.0
        %1359 = vmatpush1.msra.mxu0 0.0
        %1360 = vmatprep.subr.mxu0 0.0
        %1361 = vmatpush1.msra.mxu0 0.0
        %1362 = vmatprep.subr.mxu0 0.0
        %1363 = vmatpush1.msra.mxu0 0.0
        %1364 = vmatprep.subr.mxu0 0.0
        %1365 = vmatpush1.msra.mxu0 0.0
        %1366 = vmatprep.subr.mxu0 0.0
        %1367 = vmatpush1.msra.mxu0 0.0
        %1368 = vmatprep.subr.mxu0 0.0
        %1369 = vmatpush1.msra.mxu0 0.0
        %1370 = vmatprep.subr.mxu0 0.0
        %1371 = vmatpush1.msra.mxu0 0.0
        %1372 = vmatprep.subr.mxu0 0.0
        %1373 = vmatpush1.msra.mxu0 0.0
        %1374 = vmatprep.subr.mxu0 0.0
        %1375 = vmatpush1.msra.mxu0 0.0
        %1376 = vmatprep.subr.mxu0 0.0
        %1377 = vmatpush1.msra.mxu0 0.0
        %1378 = vmatprep.subr.mxu0 0.0
        %1379 = vmatpush1.msra.mxu0 0.0
        %1380 = vmatprep.subr.mxu0 0.0
        %1381 = vmatpush1.msra.mxu0 0.0
        %1382 = vmatprep.subr.mxu0 0.0
        %1383 = vmatpush1.msra.mxu0 0.0
        %1384 = vmatprep.mubr.f32.mxu0 0.0
        %v1385 = vand.u32 %v1237, 4294901760
        %1386 = vmatmul.mubr.f32.gmra.mrb[0].mxu0 %v1385
        %v1387 = vpop.f32.mrb[0].mxu0
        %v1388 = vadd.f32 %v1312, %v1387
        %v1389 = vpop.f32.mrb[0].mxu0
        %1390 = vdwg.mxu0
        %1391 = vmatprep.subr.mxu0 0.0
        %v1392 = vand.u32 %v1230, 4294901760
        %v1393 = vsub.f32 %v1230, %v1392
        %1394 = vmatpush1.msra.mxu0 %v1393
        %1395 = vmatprep.subr.mxu0 0.0
        %1396 = vmatpush1.msra.mxu0 0.0
        %1397 = vmatprep.subr.mxu0 0.0
        %1398 = vmatpush1.msra.mxu0 0.0
        %1399 = vmatprep.subr.mxu0 0.0
        %1400 = vmatpush1.msra.mxu0 0.0
        %1401 = vmatprep.subr.mxu0 0.0
        %1402 = vmatpush1.msra.mxu0 0.0
        %1403 = vmatprep.subr.mxu0 0.0
        %1404 = vmatpush1.msra.mxu0 0.0
        %1405 = vmatprep.subr.mxu0 0.0
        %1406 = vmatpush1.msra.mxu0 0.0
        %1407 = vmatprep.subr.mxu0 0.0
        %1408 = vmatpush1.msra.mxu0 0.0
        %1409 = vmatprep.subr.mxu0 0.0
        %1410 = vmatpush1.msra.mxu0 0.0
        %1411 = vmatprep.subr.mxu0 0.0
        %1412 = vmatpush1.msra.mxu0 0.0
        %1413 = vmatprep.subr.mxu0 0.0
        %1414 = vmatpush1.msra.mxu0 0.0
        %1415 = vmatprep.subr.mxu0 0.0
        %1416 = vmatpush1.msra.mxu0 0.0
        %1417 = vmatprep.subr.mxu0 0.0
        %1418 = vmatpush1.msra.mxu0 0.0
        %1419 = vmatprep.subr.mxu0 0.0
        %1420 = vmatpush1.msra.mxu0 0.0
        %1421 = vmatprep.subr.mxu0 0.0
        %1422 = vmatpush1.msra.mxu0 0.0
        %1423 = vmatprep.subr.mxu0 0.0
        %1424 = vmatpush1.msra.mxu0 0.0
        %1425 = vmatprep.subr.mxu0 0.0
        %1426 = vmatpush1.msra.mxu0 0.0
        %1427 = vmatprep.subr.mxu0 0.0
        %1428 = vmatpush1.msra.mxu0 0.0
        %1429 = vmatprep.subr.mxu0 0.0
        %1430 = vmatpush1.msra.mxu0 0.0
        %1431 = vmatprep.subr.mxu0 0.0
        %1432 = vmatpush1.msra.mxu0 0.0
        %1433 = vmatprep.subr.mxu0 0.0
        %1434 = vmatpush1.msra.mxu0 0.0
        %1435 = vmatprep.subr.mxu0 0.0
        %1436 = vmatpush1.msra.mxu0 0.0
        %1437 = vmatprep.subr.mxu0 0.0
        %1438 = vmatpush1.msra.mxu0 0.0
        %1439 = vmatprep.subr.mxu0 0.0
        %1440 = vmatpush1.msra.mxu0 0.0
        %1441 = vmatprep.subr.mxu0 0.0
        %1442 = vmatpush1.msra.mxu0 0.0
        %1443 = vmatprep.subr.mxu0 0.0
        %1444 = vmatpush1.msra.mxu0 0.0
        %1445 = vmatprep.subr.mxu0 0.0
        %1446 = vmatpush1.msra.mxu0 0.0
        %1447 = vmatprep.subr.mxu0 0.0
        %1448 = vmatpush1.msra.mxu0 0.0
        %1449 = vmatprep.subr.mxu0 0.0
        %1450 = vmatpush1.msra.mxu0 0.0
        %1451 = vmatprep.subr.mxu0 0.0
        %1452 = vmatpush1.msra.mxu0 0.0
        %1453 = vmatprep.subr.mxu0 0.0
        %1454 = vmatpush1.msra.mxu0 0.0
        %1455 = vmatprep.subr.mxu0 0.0
        %1456 = vmatpush1.msra.mxu0 0.0
        %1457 = vmatprep.mubr.f32.mxu0 0.0
        %v1458 = vand.u32 %v1237, 4294901760
        %v1459 = vsub.f32 %v1237, %v1458
        %1460 = vmatmul.mubr.f32.gmra.mrb[0].mxu0 %v1459
        %v1461 = vpop.f32.mrb[0].mxu0
        %v1462 = vadd.f32 %v1388, %v1461
        %v1463 = vpop.f32.mrb[0].mxu0
        %1464 = vdwg.mxu0
        %1465 = vmatprep.subr.mxu0 0.0
        %v1466 = vand.u32 %v1230, 4294901760
        %1467 = vmatpush1.msra.mxu0 %v1466
        %1468 = vmatprep.subr.mxu0 0.0
        %1469 = vmatpush1.msra.mxu0 0.0
        %1470 = vmatprep.subr.mxu0 0.0
        %1471 = vmatpush1.msra.mxu0 0.0
        %1472 = vmatprep.subr.mxu0 0.0
        %1473 = vmatpush1.msra.mxu0 0.0
        %1474 = vmatprep.subr.mxu0 0.0
        %1475 = vmatpush1.msra.mxu0 0.0
        %1476 = vmatprep.subr.mxu0 0.0
        %1477 = vmatpush1.msra.mxu0 0.0
        %1478 = vmatprep.subr.mxu0 0.0
        %1479 = vmatpush1.msra.mxu0 0.0
        %1480 = vmatprep.subr.mxu0 0.0
        %1481 = vmatpush1.msra.mxu0 0.0
        %1482 = vmatprep.subr.mxu0 0.0
        %1483 = vmatpush1.msra.mxu0 0.0
        %1484 = vmatprep.subr.mxu0 0.0
        %1485 = vmatpush1.msra.mxu0 0.0
        %1486 = vmatprep.subr.mxu0 0.0
        %1487 = vmatpush1.msra.mxu0 0.0
        %1488 = vmatprep.subr.mxu0 0.0
        %1489 = vmatpush1.msra.mxu0 0.0
        %1490 = vmatprep.subr.mxu0 0.0
        %1491 = vmatpush1.msra.mxu0 0.0
        %1492 = vmatprep.subr.mxu0 0.0
        %1493 = vmatpush1.msra.mxu0 0.0
        %1494 = vmatprep.subr.mxu0 0.0
        %1495 = vmatpush1.msra.mxu0 0.0
        %1496 = vmatprep.subr.mxu0 0.0
        %1497 = vmatpush1.msra.mxu0 0.0
        %1498 = vmatprep.subr.mxu0 0.0
        %1499 = vmatpush1.msra.mxu0 0.0
        %1500 = vmatprep.subr.mxu0 0.0
        %1501 = vmatpush1.msra.mxu0 0.0
        %1502 = vmatprep.subr.mxu0 0.0
        %1503 = vmatpush1.msra.mxu0 0.0
        %1504 = vmatprep.subr.mxu0 0.0
        %1505 = vmatpush1.msra.mxu0 0.0
        %1506 = vmatprep.subr.mxu0 0.0
        %1507 = vmatpush1.msra.mxu0 0.0
        %1508 = vmatprep.subr.mxu0 0.0
        %1509 = vmatpush1.msra.mxu0 0.0
        %1510 = vmatprep.subr.mxu0 0.0
        %1511 = vmatpush1.msra.mxu0 0.0
        %1512 = vmatprep.subr.mxu0 0.0
        %1513 = vmatpush1.msra.mxu0 0.0
        %1514 = vmatprep.subr.mxu0 0.0
        %1515 = vmatpush1.msra.mxu0 0.0
        %1516 = vmatprep.subr.mxu0 0.0
        %1517 = vmatpush1.msra.mxu0 0.0
        %1518 = vmatprep.subr.mxu0 0.0
        %1519 = vmatpush1.msra.mxu0 0.0
        %1520 = vmatprep.subr.mxu0 0.0
        %1521 = vmatpush1.msra.mxu0 0.0
        %1522 = vmatprep.subr.mxu0 0.0
        %1523 = vmatpush1.msra.mxu0 0.0
        %1524 = vmatprep.subr.mxu0 0.0
        %1525 = vmatpush1.msra.mxu0 0.0
        %1526 = vmatprep.subr.mxu0 0.0
        %1527 = vmatpush1.msra.mxu0 0.0
        %1528 = vmatprep.subr.mxu0 0.0
        %1529 = vmatpush1.msra.mxu0 0.0
        %1530 = vmatprep.mubr.f32.mxu0 0.0
        %v1531 = vand.u32 %v1237, 4294901760
        %v1532 = vsub.f32 %v1237, %v1531
        %v1533 = vand.u32 %v1532, 4294901760
        %1534 = vmatmul.mubr.f32.gmra.mrb[0].mxu0 %v1533
        %v1535 = vpop.f32.mrb[0].mxu0
        %v1536 = vadd.f32 %v1462, %v1535
        %v1537 = vpop.f32.mrb[0].mxu0
        %1538 = vdwg.mxu0
        %1539 = vmatprep.subr.mxu0 0.0
        %v1540 = vand.u32 %v1230, 4294901760
        %v1541 = vsub.f32 %v1230, %v1540
        %v1542 = vand.u32 %v1541, 4294901760
        %1543 = vmatpush1.msra.mxu0 %v1542
        %1544 = vmatprep.subr.mxu0 0.0
        %1545 = vmatpush1.msra.mxu0 0.0
        %1546 = vmatprep.subr.mxu0 0.0
        %1547 = vmatpush1.msra.mxu0 0.0
        %1548 = vmatprep.subr.mxu0 0.0
        %1549 = vmatpush1.msra.mxu0 0.0
        %1550 = vmatprep.subr.mxu0 0.0
        %1551 = vmatpush1.msra.mxu0 0.0
        %1552 = vmatprep.subr.mxu0 0.0
        %1553 = vmatpush1.msra.mxu0 0.0
        %1554 = vmatprep.subr.mxu0 0.0
        %1555 = vmatpush1.msra.mxu0 0.0
        %1556 = vmatprep.subr.mxu0 0.0
        %1557 = vmatpush1.msra.mxu0 0.0
        %1558 = vmatprep.subr.mxu0 0.0
        %1559 = vmatpush1.msra.mxu0 0.0
        %1560 = vmatprep.subr.mxu0 0.0
        %1561 = vmatpush1.msra.mxu0 0.0
        %1562 = vmatprep.subr.mxu0 0.0
        %1563 = vmatpush1.msra.mxu0 0.0
        %1564 = vmatprep.subr.mxu0 0.0
        %1565 = vmatpush1.msra.mxu0 0.0
        %1566 = vmatprep.subr.mxu0 0.0
        %1567 = vmatpush1.msra.mxu0 0.0
        %1568 = vmatprep.subr.mxu0 0.0
        %1569 = vmatpush1.msra.mxu0 0.0
        %1570 = vmatprep.subr.mxu0 0.0
        %1571 = vmatpush1.msra.mxu0 0.0
        %1572 = vmatprep.subr.mxu0 0.0
        %1573 = vmatpush1.msra.mxu0 0.0
        %1574 = vmatprep.subr.mxu0 0.0
        %1575 = vmatpush1.msra.mxu0 0.0
        %1576 = vmatprep.subr.mxu0 0.0
        %1577 = vmatpush1.msra.mxu0 0.0
        %1578 = vmatprep.subr.mxu0 0.0
        %1579 = vmatpush1.msra.mxu0 0.0
        %1580 = vmatprep.subr.mxu0 0.0
        %1581 = vmatpush1.msra.mxu0 0.0
        %1582 = vmatprep.subr.mxu0 0.0
        %1583 = vmatpush1.msra.mxu0 0.0
        %1584 = vmatprep.subr.mxu0 0.0
        %1585 = vmatpush1.msra.mxu0 0.0
        %1586 = vmatprep.subr.mxu0 0.0
        %1587 = vmatpush1.msra.mxu0 0.0
        %1588 = vmatprep.subr.mxu0 0.0
        %1589 = vmatpush1.msra.mxu0 0.0
        %1590 = vmatprep.subr.mxu0 0.0
        %1591 = vmatpush1.msra.mxu0 0.0
        %1592 = vmatprep.subr.mxu0 0.0
        %1593 = vmatpush1.msra.mxu0 0.0
        %1594 = vmatprep.subr.mxu0 0.0
        %1595 = vmatpush1.msra.mxu0 0.0
        %1596 = vmatprep.subr.mxu0 0.0
        %1597 = vmatpush1.msra.mxu0 0.0
        %1598 = vmatprep.subr.mxu0 0.0
        %1599 = vmatpush1.msra.mxu0 0.0
        %1600 = vmatprep.subr.mxu0 0.0
        %1601 = vmatpush1.msra.mxu0 0.0
        %1602 = vmatprep.subr.mxu0 0.0
        %1603 = vmatpush1.msra.mxu0 0.0
        %1604 = vmatprep.subr.mxu0 0.0
        %1605 = vmatpush1.msra.mxu0 0.0
        %1606 = vmatprep.mubr.f32.mxu0 0.0
        %v1607 = vand.u32 %v1237, 4294901760
        %1608 = vmatmul.mubr.f32.gmra.mrb[0].mxu0 %v1607
        %v1609 = vpop.f32.mrb[0].mxu0
        %v1610 = vadd.f32 %v1536, %v1609
        %v1611 = vpop.f32.mrb[0].mxu0
        %1612 = vdwg.mxu0
        %1613 = vmatprep.subr.mxu0 0.0
        %v1614 = vand.u32 %v1230, 4294901760
        %1615 = vmatpush1.msra.mxu0 %v1614
        %1616 = vmatprep.subr.mxu0 0.0
        %1617 = vmatpush1.msra.mxu0 0.0
        %1618 = vmatprep.subr.mxu0 0.0
        %1619 = vmatpush1.msra.mxu0 0.0
        %1620 = vmatprep.subr.mxu0 0.0
        %1621 = vmatpush1.msra.mxu0 0.0
        %1622 = vmatprep.subr.mxu0 0.0
        %1623 = vmatpush1.msra.mxu0 0.0
        %1624 = vmatprep.subr.mxu0 0.0
        %1625 = vmatpush1.msra.mxu0 0.0
        %1626 = vmatprep.subr.mxu0 0.0
        %1627 = vmatpush1.msra.mxu0 0.0
        %1628 = vmatprep.subr.mxu0 0.0
        %1629 = vmatpush1.msra.mxu0 0.0
        %1630 = vmatprep.subr.mxu0 0.0
        %1631 = vmatpush1.msra.mxu0 0.0
        %1632 = vmatprep.subr.mxu0 0.0
        %1633 = vmatpush1.msra.mxu0 0.0
        %1634 = vmatprep.subr.mxu0 0.0
        %1635 = vmatpush1.msra.mxu0 0.0
        %1636 = vmatprep.subr.mxu0 0.0
        %1637 = vmatpush1.msra.mxu0 0.0
        %1638 = vmatprep.subr.mxu0 0.0
        %1639 = vmatpush1.msra.mxu0 0.0
        %1640 = vmatprep.subr.mxu0 0.0
        %1641 = vmatpush1.msra.mxu0 0.0
        %1642 = vmatprep.subr.mxu0 0.0
        %1643 = vmatpush1.msra.mxu0 0.0
        %1644 = vmatprep.subr.mxu0 0.0
        %1645 = vmatpush1.msra.mxu0 0.0
        %1646 = vmatprep.subr.mxu0 0.0
        %1647 = vmatpush1.msra.mxu0 0.0
        %1648 = vmatprep.subr.mxu0 0.0
        %1649 = vmatpush1.msra.mxu0 0.0
        %1650 = vmatprep.subr.mxu0 0.0
        %1651 = vmatpush1.msra.mxu0 0.0
        %1652 = vmatprep.subr.mxu0 0.0
        %1653 = vmatpush1.msra.mxu0 0.0
        %1654 = vmatprep.subr.mxu0 0.0
        %1655 = vmatpush1.msra.mxu0 0.0
        %1656 = vmatprep.subr.mxu0 0.0
        %1657 = vmatpush1.msra.mxu0 0.0
        %1658 = vmatprep.subr.mxu0 0.0
        %1659 = vmatpush1.msra.mxu0 0.0
        %1660 = vmatprep.subr.mxu0 0.0
        %1661 = vmatpush1.msra.mxu0 0.0
        %1662 = vmatprep.subr.mxu0 0.0
        %1663 = vmatpush1.msra.mxu0 0.0
        %1664 = vmatprep.subr.mxu0 0.0
        %1665 = vmatpush1.msra.mxu0 0.0
        %1666 = vmatprep.subr.mxu0 0.0
        %1667 = vmatpush1.msra.mxu0 0.0
        %1668 = vmatprep.subr.mxu0 0.0
        %1669 = vmatpush1.msra.mxu0 0.0
        %1670 = vmatprep.subr.mxu0 0.0
        %1671 = vmatpush1.msra.mxu0 0.0
        %1672 = vmatprep.subr.mxu0 0.0
        %1673 = vmatpush1.msra.mxu0 0.0
        %1674 = vmatprep.subr.mxu0 0.0
        %1675 = vmatpush1.msra.mxu0 0.0
        %1676 = vmatprep.subr.mxu0 0.0
        %1677 = vmatpush1.msra.mxu0 0.0
        %1678 = vmatprep.mubr.f32.mxu0 0.0
        %v1679 = vand.u32 %v1237, 4294901760
        %1680 = vmatmul.mubr.f32.gmra.mrb[0].mxu0 %v1679
        %v1681 = vpop.f32.mrb[0].mxu0
        %v1682 = vadd.f32 %v1610, %v1681
        %v1683 = vpop.f32.mrb[0].mxu0
        %1684 = vdwg.mxu0
        %v1685 = vmax.f32 %v1682, 0.0
        %1687 = vset.pattern.permute.xlu0 0
        %1688 = vperm.xlu0 %1687, %v315
        %v1689 = vpop.permute.xlu0 %1688
        %v1691 = vmul.f32 %v1685, %v1689
        %v1692 = vrot.slane %v1691, 4
        %v1693 = vadd.f32 %v1691, %v1692
        %v1694 = vrot.slane %v1693, 2
        %v1695 = vadd.f32 %v1693, %v1694
        %v1696 = vrot.slane %v1695, 1
        %v1697 = vadd.f32 %v1695, %v1696
        %v1698 = vadd.f32 %v324, %v1697
        %s1699 = sld [smem:[#allocation2]]
        %v1700 = vstv %s1699
        %v1701 = vadd.f32 %v1698, %v1700
        %v1702 = vxor.u32 %v1701, 2147483648
        %v1703 = vmul.f32 %v1702, 1.442695
        %v1704 = vpow.pop %v1703
        %v1705 = vadd.f32 %v1704, 1.0
        %v1706 = vrcp.pop %v1705
        %v1707 = vmul.f32 1.0, %v1706
        %v1708 = vmul.f32 %v1707, 4.0
        %v1709 = vadd.f32 %v1708, 1.0
        %1710 = vst [vmem:[%s303] sm:$0x1] %v1709
        %s1711 = sand.u32 %s146, 1
        %s1712 = scalar_lea.sflag [#allocation6], %s1711
        %s1713 = sand.u32 %s146, 1
        %s1714 = scalar_lea.vmem [#allocation7], %s1713
        // Predicated region
        $region83: #{tpu_custom_call.1} parent=73 // pred_check
          %p1715 = pneg %p156
        $region84: #{tpu_custom_call.1} parent=73 // pred_check_branch
          %1717 = sbr.rel (%p1715) target = $region86
        $region85: #{tpu_custom_call.1} parent=73 // pred_region
          %s1719 = ssub.s32 16, 16
          %1720 = vsyncadd %s1712, %s1719
          %s1721 = smul.addr %s23, 16
          %s1722 = scalar_lea.hbm %s5, %s1721
          %s1724 = sshll.u32 %s1714, 4
          %s1725 = int_to_ptr.vmem [resolvable:$true] %s1724
          %1727 = dma.vmem_to_hbm [thread:$0]  %s1725, 16, %s1722, %s1712
        $region86: #{tpu_custom_call.1} parent=73 // pred_fallthru
          _
      $region74: #{tpu_custom_call.1} parent=5 // pred_fallthru
        _
      %p1728 = scmp.le.s32.totalorder 2, %s18
      // Predicated region
      $region87: #{tpu_custom_call.1} parent=5 // pred_check
        %p1729 = pneg %p1728
      $region88: #{tpu_custom_call.1} parent=5 // pred_check_branch
        %1731 = sbr.rel (%p1729) target = $region90
      $region89: #{tpu_custom_call.1} parent=5 // pred_region
        %s1732 = ssub.s32 %s18, 2
        // Predicated region
        $region91: #{tpu_custom_call.1} parent=89 // pred_check
          %p1733 = pneg %p162
        $region92: #{tpu_custom_call.1} parent=89 // pred_check_branch
          %1735 = sbr.rel (%p1733) target = $region94
        $region93: #{tpu_custom_call.1} parent=89 // pred_region
          %s1736 = sand.u32 %s147, 1
          %s1737 = scalar_lea.sflag [#allocation6], %s1736
          %s1738 = sand.u32 %s147, 1
          %s1739 = scalar_lea.vmem [#allocation7], %s1738
          %1740 = dma.done %s1737, 16
        $region94: #{tpu_custom_call.1} parent=89 // pred_fallthru
          _
      $region90: #{tpu_custom_call.1} parent=5 // pred_fallthru
        _
    $region6: #{tpu_custom_call.1} parent=1 // loop_footer
      %s22 = sadd.s32 1, %s18
    $region7: #{tpu_custom_call.1} parent=1 // loop_footer_branch
      %17 = sbr.rel target = $region3
    $region8: #{tpu_custom_call.1} parent=1 // loop_exit
      _
    %1741 = vsyncpa [#allocation5], 1
    %s1742 = scalar_lea.sflag [#allocation5], 1
    %1743 = vsyncpa %s1742, 1
    %1744 = vsyncpa [#allocation6], 1
    %s1745 = scalar_lea.sflag [#allocation6], 1
    %1746 = vsyncpa %s1745, 1

</llo_original>
